<compile_context>
chip_gen: v7x
topology: tpu7x:2x2x1
jax: 0.10.0
libtpu: 0.0.40
codegen_flags: <defaults>
</compile_context>

<pallas_src>
import jax
import jax.numpy as jnp
from jax.experimental import pallas as pl
from jax.experimental.pallas import tpu as pltpu


def _temporal_decoder_kernel(h0_ref, gru_ref, fc_ref, out_ref, hs_ref):
    B, H = h0_ref.shape
    gate_stride = gru_ref.shape[1] // 3         # lane stride between gate blocks (>=128)
    TH = hs_ref.shape[1]                        # T * H
    T = TH // H

    # GRU slab layout (built once in pack_temporal_decoder_params):
    #   rows 0..H-1 : [W_hr^T | W_hz^T | W_hn^T] at lane offsets 0 / gs / 2*gs
    #   row  H      : [b_ir+b_hr | b_iz+b_hz | b_hn]   (added before the gate nonlinearity)
    #   row  H+1    : [b_in]                           (added outside r * (...))
    w_rzn = gru_ref[0:H, :]                     # (H, 3*gs) fused recurrent weights
    b_rzn = gru_ref[H:H + 1, :]                 # (1, 3*gs) fused biases
    b_in = gru_ref[H + 1:H + 2, 0:H]            # (1, H)

    h = h0_ref[...].astype(jnp.float32)         # (B, H) carried hidden state

    # T is static -> fully unrolled serial recurrence (h is the only loop carry).
    for t in range(T):
        g = jnp.dot(h, w_rzn, preferred_element_type=jnp.float32) + b_rzn
        r = jax.nn.sigmoid(g[:, 0:H])                                   # vreg block 0
        z = jax.nn.sigmoid(g[:, gate_stride:gate_stride + H])           # vreg block 1
        n = jnp.tanh(b_in + r * g[:, 2 * gate_stride:2 * gate_stride + H])  # block 2
        h = n + z * (h - n)
        hs_ref[:, t * H:(t + 1) * H] = h        # history write, off the serial chain

    # Single hoisted, lane-dense fc projection:
    #   (B, T*H) @ block_diag_T(W_fc^T) + tiled bias  ->  (B, T*D), batch-major rows.
    out = jnp.dot(hs_ref[...], fc_ref[0:TH, :],
                  preferred_element_type=jnp.float32) + fc_ref[TH:TH + 1, :]
    out_ref[...] = out.astype(out_ref.dtype)


def pack_temporal_decoder_params(w_ih, w_hh, b_ih, b_hh, w_fc, b_fc, seq_length):
    """One-time packing of PyTorch-layout params (gate order r, z, n):
         w_ih (3H, D), w_hh (3H, H), b_ih/b_hh (3H,), w_fc (D, H), b_fc (D,).
       Returns (gru_slab (H+2, 3*gs), fc_slab (T*H+1, T*D)) in f32.
       w_ih is unused: the GRU input is identically zero, only b_ih survives."""
    del w_ih
    H = w_hh.shape[1]
    D = w_fc.shape[0]
    T = seq_length
    f32 = jnp.float32
    gs = ((H + 127) // 128) * 128               # vreg-aligned lane stride per gate

    b_ih = b_ih.astype(f32)
    b_hh = b_hh.astype(f32)

    gru_slab = jnp.zeros((H + 2, 3 * gs), f32)
    for gate in range(3):                        # r, z, n recurrent weights, transposed
        gru_slab = gru_slab.at[0:H, gate * gs:gate * gs + H].set(
            jnp.transpose(w_hh[gate * H:(gate + 1) * H, :]).astype(f32))
    gru_slab = gru_slab.at[H, 0:H].set(b_ih[0:H] + b_hh[0:H])                 # r
    gru_slab = gru_slab.at[H, gs:gs + H].set(b_ih[H:2 * H] + b_hh[H:2 * H])   # z
    gru_slab = gru_slab.at[H, 2 * gs:2 * gs + H].set(b_hh[2 * H:3 * H])       # b_hn
    gru_slab = gru_slab.at[H + 1, 0:H].set(b_ih[2 * H:3 * H])                 # b_in

    # Block-diagonal fc weight so all T per-step projections become one lane-dense
    # matmul with batch-major output columns t*D + d.
    wfc_t = jnp.transpose(w_fc).astype(f32)                                   # (H, D)
    w_big = jnp.kron(jnp.eye(T, dtype=f32), wfc_t)                            # (T*H, T*D)
    b_big = jnp.tile(b_fc.astype(f32).reshape(1, D), (1, T))                  # (1, T*D)
    fc_slab = jnp.concatenate([w_big, b_big], axis=0)                         # (T*H+1, T*D)
    return gru_slab, fc_slab


def temporal_decoder_forward(latent_B, gru_slab, fc_slab, seq_length):
    """latent_B: (B, H). Returns (B, seq_length, D)."""
    B, H = latent_B.shape
    T = seq_length
    D = fc_slab.shape[1] // T

    vmem = pl.BlockSpec(memory_space=pltpu.MemorySpace.VMEM)
    out = pl.pallas_call(
        _temporal_decoder_kernel,
        out_shape=jax.ShapeDtypeStruct((B, T * D), latent_B.dtype),
        in_specs=[vmem, vmem, vmem],
        out_specs=vmem,
        scratch_shapes=[pltpu.VMEM((B, T * H), jnp.float32)],
    )(latent_B.astype(jnp.float32), gru_slab, fc_slab)

    # Kernel rows are batch-major with columns t*D + d -> contiguous reshape, no transpose.
    return out.reshape(B, T, D)


def _reference_temporal_decoder(latent_B, w_ih, w_hh, b_ih, b_hh, w_fc, b_fc, seq_length):
    """Pure-JAX reference of the PyTorch module (zero GRU inputs, h_0 = latent_B, then fc)."""
    B, H = latent_B.shape
    h = latent_B.astype(jnp.float32)
    x_t = jnp.zeros((B, w_ih.shape[1]), jnp.float32)
    outs = []
    for _ in range(seq_length):
        gi = x_t @ w_ih.T + b_ih
        gh = h @ w_hh.T + b_hh
        r = jax.nn.sigmoid(gi[:, :H] + gh[:, :H])
        z = jax.nn.sigmoid(gi[:, H:2 * H] + gh[:, H:2 * H])
        n = jnp.tanh(gi[:, 2 * H:] + r * gh[:, 2 * H:])
        h = (1.0 - z) * n + z * h
        outs.append(h)
    hseq = jnp.stack(outs, axis=1)                 # (B, T, H)
    return (hseq @ w_fc.T + b_fc).astype(latent_B.dtype)


if __name__ == "__main__":
    # Module defaults: latent_dim_B=8, output_size=64; small seq_length=8, batch=2.
    B, H, D, T = 2, 8, 64, 8

    key = jax.random.PRNGKey(0)
    k_lat, k1, k2, k3, k4, k5, k6 = jax.random.split(key, 7)

    # Deterministic init matching PyTorch U(-1/sqrt(H), 1/sqrt(H)) for GRU and Linear.
    bound = 1.0 / jnp.sqrt(jnp.float32(H))
    w_ih = jax.random.uniform(k1, (3 * H, D), jnp.float32, -bound, bound)
    w_hh = jax.random.uniform(k2, (3 * H, H), jnp.float32, -bound, bound)
    b_ih = jax.random.uniform(k3, (3 * H,), jnp.float32, -bound, bound)
    b_hh = jax.random.uniform(k4, (3 * H,), jnp.float32, -bound, bound)
    w_fc = jax.random.uniform(k5, (D, H), jnp.float32, -bound, bound)
    b_fc = jax.random.uniform(k6, (D,), jnp.float32, -bound, bound)
    latent_B = jax.random.normal(k_lat, (B, H), jnp.float32)

    # One-time parameter packing (lives at module-init time in production, not per call).
    gru_slab, fc_slab = pack_temporal_decoder_params(w_ih, w_hh, b_ih, b_hh, w_fc, b_fc, T)

    out = temporal_decoder_forward(latent_B, gru_slab, fc_slab, T)
    out = jax.block_until_ready(out)

    ref = _reference_temporal_decoder(latent_B, w_ih, w_hh, b_ih, b_hh, w_fc, b_fc, T)
    assert out.shape == (B, T, D)
    assert jnp.allclose(out, ref, atol=1e-5, rtol=1e-5), float(jnp.abs(out - ref).max())

    print("KERNEL_OK")
</pallas_src>

<mosaic_0001>
module attributes {stable_mosaic.version = 11 : i64} {
  func.func @_temporal_decoder_kernel(%arg0: memref<2x8xf32, #tpu.memory_space<vmem>>, %arg1: memref<10x384xf32, #tpu.memory_space<vmem>>, %arg2: memref<65x512xf32, #tpu.memory_space<vmem>>, %arg3: memref<2x512xf32, #tpu.memory_space<vmem>>, %arg4: memref<2x64xf32, #tpu.memory_space<vmem>>) attributes {dimension_semantics = [], scalar_prefetch = 0 : i64, scratch_operands = 1 : i64, tpu.core_type = #tpu.core_type<tc>} {
    %c0 = arith.constant 0 : index
    %c0_0 = arith.constant 0 : index
    %0 = vector.load %arg1[%c0, %c0_0] : memref<10x384xf32, #tpu.memory_space<vmem>>, vector<8x384xf32>
    %c8 = arith.constant 8 : index
    %c0_1 = arith.constant 0 : index
    %1 = vector.load %arg1[%c8, %c0_1] : memref<10x384xf32, #tpu.memory_space<vmem>>, vector<1x384xf32>
    %c9 = arith.constant 9 : index
    %c0_2 = arith.constant 0 : index
    %2 = vector.load %arg1[%c9, %c0_2] : memref<10x384xf32, #tpu.memory_space<vmem>>, vector<1x8xf32>
    %c0_3 = arith.constant 0 : index
    %c0_4 = arith.constant 0 : index
    %3 = vector.load %arg0[%c0_3, %c0_4] : memref<2x8xf32, #tpu.memory_space<vmem>>, vector<2x8xf32>
    %cst = arith.constant dense<0.000000e+00> : vector<2x384xf32>
    %4 = tpu.matmul %3, %0, %cst {dimension_numbers = #tpu.dot_dimension_numbers<[1], [0], [0], [1], [0, 0, 1, 1], [], []>} : vector<2x8xf32>, vector<8x384xf32>, vector<2x384xf32> -> vector<2x384xf32>
    %5 = vector.broadcast %1 : vector<1x384xf32> to vector<2x384xf32>
    %6 = arith.addf %4, %5 : vector<2x384xf32>
    %7 = vector.extract_strided_slice %6 {offsets = [0, 0], sizes = [2, 8], strides = [1, 1]} : vector<2x384xf32> to vector<2x8xf32>
    %8 = arith.negf %7 : vector<2x8xf32>
    %9 = math.exp %8 : vector<2x8xf32>
    %cst_5 = arith.constant 1.000000e+00 : f32
    %10 = vector.broadcast %cst_5 : f32 to vector<2x8xf32>
    %11 = arith.addf %10, %9 : vector<2x8xf32>
    %12 = arith.divf %10, %11 : vector<2x8xf32>
    %13 = vector.extract_strided_slice %6 {offsets = [0, 128], sizes = [2, 8], strides = [1, 1]} : vector<2x384xf32> to vector<2x8xf32>
    %14 = arith.negf %13 : vector<2x8xf32>
    %15 = math.exp %14 : vector<2x8xf32>
    %cst_6 = arith.constant 1.000000e+00 : f32
    %16 = vector.broadcast %cst_6 : f32 to vector<2x8xf32>
    %17 = arith.addf %16, %15 : vector<2x8xf32>
    %18 = arith.divf %16, %17 : vector<2x8xf32>
    %19 = vector.extract_strided_slice %6 {offsets = [0, 256], sizes = [2, 8], strides = [1, 1]} : vector<2x384xf32> to vector<2x8xf32>
    %20 = arith.mulf %12, %19 : vector<2x8xf32>
    %21 = vector.broadcast %2 : vector<1x8xf32> to vector<2x8xf32>
    %22 = arith.addf %21, %20 : vector<2x8xf32>
    %23 = math.tanh %22 : vector<2x8xf32>
    %24 = arith.subf %3, %23 : vector<2x8xf32>
    %25 = arith.mulf %18, %24 : vector<2x8xf32>
    %26 = arith.addf %23, %25 : vector<2x8xf32>
    %c0_7 = arith.constant 0 : index
    %c0_8 = arith.constant 0 : index
    %27 = vector.load %arg4[%c0_7, %c0_8] : memref<2x64xf32, #tpu.memory_space<vmem>>, vector<2x8xf32>
    tpu.vector_store %arg4[%c0_7, %c0_8], %26 {strides = array<i32>} : memref<2x64xf32, #tpu.memory_space<vmem>>, vector<2x8xf32>,
    %cst_9 = arith.constant dense<0.000000e+00> : vector<2x384xf32>
    %28 = tpu.matmul %26, %0, %cst_9 {dimension_numbers = #tpu.dot_dimension_numbers<[1], [0], [0], [1], [0, 0, 1, 1], [], []>} : vector<2x8xf32>, vector<8x384xf32>, vector<2x384xf32> -> vector<2x384xf32>
    %29 = vector.broadcast %1 : vector<1x384xf32> to vector<2x384xf32>
    %30 = arith.addf %28, %29 : vector<2x384xf32>
    %31 = vector.extract_strided_slice %30 {offsets = [0, 0], sizes = [2, 8], strides = [1, 1]} : vector<2x384xf32> to vector<2x8xf32>
    %32 = arith.negf %31 : vector<2x8xf32>
    %33 = math.exp %32 : vector<2x8xf32>
    %cst_10 = arith.constant 1.000000e+00 : f32
    %34 = vector.broadcast %cst_10 : f32 to vector<2x8xf32>
    %35 = arith.addf %34, %33 : vector<2x8xf32>
    %36 = arith.divf %34, %35 : vector<2x8xf32>
    %37 = vector.extract_strided_slice %30 {offsets = [0, 128], sizes = [2, 8], strides = [1, 1]} : vector<2x384xf32> to vector<2x8xf32>
    %38 = arith.negf %37 : vector<2x8xf32>
    %39 = math.exp %38 : vector<2x8xf32>
    %cst_11 = arith.constant 1.000000e+00 : f32
    %40 = vector.broadcast %cst_11 : f32 to vector<2x8xf32>
    %41 = arith.addf %40, %39 : vector<2x8xf32>
    %42 = arith.divf %40, %41 : vector<2x8xf32>
    %43 = vector.extract_strided_slice %30 {offsets = [0, 256], sizes = [2, 8], strides = [1, 1]} : vector<2x384xf32> to vector<2x8xf32>
    %44 = arith.mulf %36, %43 : vector<2x8xf32>
    %45 = vector.broadcast %2 : vector<1x8xf32> to vector<2x8xf32>
    %46 = arith.addf %45, %44 : vector<2x8xf32>
    %47 = math.tanh %46 : vector<2x8xf32>
    %48 = arith.subf %26, %47 : vector<2x8xf32>
    %49 = arith.mulf %42, %48 : vector<2x8xf32>
    %50 = arith.addf %47, %49 : vector<2x8xf32>
    %c0_12 = arith.constant 0 : index
    %c8_13 = arith.constant 8 : index
    %51 = vector.load %arg4[%c0_12, %c8_13] : memref<2x64xf32, #tpu.memory_space<vmem>>, vector<2x8xf32>
    tpu.vector_store %arg4[%c0_12, %c8_13], %50 {strides = array<i32>} : memref<2x64xf32, #tpu.memory_space<vmem>>, vector<2x8xf32>,
    %cst_14 = arith.constant dense<0.000000e+00> : vector<2x384xf32>
    %52 = tpu.matmul %50, %0, %cst_14 {dimension_numbers = #tpu.dot_dimension_numbers<[1], [0], [0], [1], [0, 0, 1, 1], [], []>} : vector<2x8xf32>, vector<8x384xf32>, vector<2x384xf32> -> vector<2x384xf32>
    %53 = vector.broadcast %1 : vector<1x384xf32> to vector<2x384xf32>
    %54 = arith.addf %52, %53 : vector<2x384xf32>
    %55 = vector.extract_strided_slice %54 {offsets = [0, 0], sizes = [2, 8], strides = [1, 1]} : vector<2x384xf32> to vector<2x8xf32>
    %56 = arith.negf %55 : vector<2x8xf32>
    %57 = math.exp %56 : vector<2x8xf32>
    %cst_15 = arith.constant 1.000000e+00 : f32
    %58 = vector.broadcast %cst_15 : f32 to vector<2x8xf32>
    %59 = arith.addf %58, %57 : vector<2x8xf32>
    %60 = arith.divf %58, %59 : vector<2x8xf32>
    %61 = vector.extract_strided_slice %54 {offsets = [0, 128], sizes = [2, 8], strides = [1, 1]} : vector<2x384xf32> to vector<2x8xf32>
    %62 = arith.negf %61 : vector<2x8xf32>
    %63 = math.exp %62 : vector<2x8xf32>
    %cst_16 = arith.constant 1.000000e+00 : f32
    %64 = vector.broadcast %cst_16 : f32 to vector<2x8xf32>
    %65 = arith.addf %64, %63 : vector<2x8xf32>
    %66 = arith.divf %64, %65 : vector<2x8xf32>
    %67 = vector.extract_strided_slice %54 {offsets = [0, 256], sizes = [2, 8], strides = [1, 1]} : vector<2x384xf32> to vector<2x8xf32>
    %68 = arith.mulf %60, %67 : vector<2x8xf32>
    %69 = vector.broadcast %2 : vector<1x8xf32> to vector<2x8xf32>
    %70 = arith.addf %69, %68 : vector<2x8xf32>
    %71 = math.tanh %70 : vector<2x8xf32>
    %72 = arith.subf %50, %71 : vector<2x8xf32>
    %73 = arith.mulf %66, %72 : vector<2x8xf32>
    %74 = arith.addf %71, %73 : vector<2x8xf32>
    %c0_17 = arith.constant 0 : index
    %c16 = arith.constant 16 : index
    %75 = vector.load %arg4[%c0_17, %c16] : memref<2x64xf32, #tpu.memory_space<vmem>>, vector<2x8xf32>
    tpu.vector_store %arg4[%c0_17, %c16], %74 {strides = array<i32>} : memref<2x64xf32, #tpu.memory_space<vmem>>, vector<2x8xf32>,
    %cst_18 = arith.constant dense<0.000000e+00> : vector<2x384xf32>
    %76 = tpu.matmul %74, %0, %cst_18 {dimension_numbers = #tpu.dot_dimension_numbers<[1], [0], [0], [1], [0, 0, 1, 1], [], []>} : vector<2x8xf32>, vector<8x384xf32>, vector<2x384xf32> -> vector<2x384xf32>
    %77 = vector.broadcast %1 : vector<1x384xf32> to vector<2x384xf32>
    %78 = arith.addf %76, %77 : vector<2x384xf32>
    %79 = vector.extract_strided_slice %78 {offsets = [0, 0], sizes = [2, 8], strides = [1, 1]} : vector<2x384xf32> to vector<2x8xf32>
    %80 = arith.negf %79 : vector<2x8xf32>
    %81 = math.exp %80 : vector<2x8xf32>
    %cst_19 = arith.constant 1.000000e+00 : f32
    %82 = vector.broadcast %cst_19 : f32 to vector<2x8xf32>
    %83 = arith.addf %82, %81 : vector<2x8xf32>
    %84 = arith.divf %82, %83 : vector<2x8xf32>
    %85 = vector.extract_strided_slice %78 {offsets = [0, 128], sizes = [2, 8], strides = [1, 1]} : vector<2x384xf32> to vector<2x8xf32>
    %86 = arith.negf %85 : vector<2x8xf32>
    %87 = math.exp %86 : vector<2x8xf32>
    %cst_20 = arith.constant 1.000000e+00 : f32
    %88 = vector.broadcast %cst_20 : f32 to vector<2x8xf32>
    %89 = arith.addf %88, %87 : vector<2x8xf32>
    %90 = arith.divf %88, %89 : vector<2x8xf32>
    %91 = vector.extract_strided_slice %78 {offsets = [0, 256], sizes = [2, 8], strides = [1, 1]} : vector<2x384xf32> to vector<2x8xf32>
    %92 = arith.mulf %84, %91 : vector<2x8xf32>
    %93 = vector.broadcast %2 : vector<1x8xf32> to vector<2x8xf32>
    %94 = arith.addf %93, %92 : vector<2x8xf32>
    %95 = math.tanh %94 : vector<2x8xf32>
    %96 = arith.subf %74, %95 : vector<2x8xf32>
    %97 = arith.mulf %90, %96 : vector<2x8xf32>
    %98 = arith.addf %95, %97 : vector<2x8xf32>
    %c0_21 = arith.constant 0 : index
    %c24 = arith.constant 24 : index
    %99 = vector.load %arg4[%c0_21, %c24] : memref<2x64xf32, #tpu.memory_space<vmem>>, vector<2x8xf32>
    tpu.vector_store %arg4[%c0_21, %c24], %98 {strides = array<i32>} : memref<2x64xf32, #tpu.memory_space<vmem>>, vector<2x8xf32>,
    %cst_22 = arith.constant dense<0.000000e+00> : vector<2x384xf32>
    %100 = tpu.matmul %98, %0, %cst_22 {dimension_numbers = #tpu.dot_dimension_numbers<[1], [0], [0], [1], [0, 0, 1, 1], [], []>} : vector<2x8xf32>, vector<8x384xf32>, vector<2x384xf32> -> vector<2x384xf32>
    %101 = vector.broadcast %1 : vector<1x384xf32> to vector<2x384xf32>
    %102 = arith.addf %100, %101 : vector<2x384xf32>
    %103 = vector.extract_strided_slice %102 {offsets = [0, 0], sizes = [2, 8], strides = [1, 1]} : vector<2x384xf32> to vector<2x8xf32>
    %104 = arith.negf %103 : vector<2x8xf32>
    %105 = math.exp %104 : vector<2x8xf32>
    %cst_23 = arith.constant 1.000000e+00 : f32
    %106 = vector.broadcast %cst_23 : f32 to vector<2x8xf32>
    %107 = arith.addf %106, %105 : vector<2x8xf32>
    %108 = arith.divf %106, %107 : vector<2x8xf32>
    %109 = vector.extract_strided_slice %102 {offsets = [0, 128], sizes = [2, 8], strides = [1, 1]} : vector<2x384xf32> to vector<2x8xf32>
    %110 = arith.negf %109 : vector<2x8xf32>
    %111 = math.exp %110 : vector<2x8xf32>
    %cst_24 = arith.constant 1.000000e+00 : f32
    %112 = vector.broadcast %cst_24 : f32 to vector<2x8xf32>
    %113 = arith.addf %112, %111 : vector<2x8xf32>
    %114 = arith.divf %112, %113 : vector<2x8xf32>
    %115 = vector.extract_strided_slice %102 {offsets = [0, 256], sizes = [2, 8], strides = [1, 1]} : vector<2x384xf32> to vector<2x8xf32>
    %116 = arith.mulf %108, %115 : vector<2x8xf32>
    %117 = vector.broadcast %2 : vector<1x8xf32> to vector<2x8xf32>
    %118 = arith.addf %117, %116 : vector<2x8xf32>
    %119 = math.tanh %118 : vector<2x8xf32>
    %120 = arith.subf %98, %119 : vector<2x8xf32>
    %121 = arith.mulf %114, %120 : vector<2x8xf32>
    %122 = arith.addf %119, %121 : vector<2x8xf32>
    %c0_25 = arith.constant 0 : index
    %c32 = arith.constant 32 : index
    %123 = vector.load %arg4[%c0_25, %c32] : memref<2x64xf32, #tpu.memory_space<vmem>>, vector<2x8xf32>
    tpu.vector_store %arg4[%c0_25, %c32], %122 {strides = array<i32>} : memref<2x64xf32, #tpu.memory_space<vmem>>, vector<2x8xf32>,
    %cst_26 = arith.constant dense<0.000000e+00> : vector<2x384xf32>
    %124 = tpu.matmul %122, %0, %cst_26 {dimension_numbers = #tpu.dot_dimension_numbers<[1], [0], [0], [1], [0, 0, 1, 1], [], []>} : vector<2x8xf32>, vector<8x384xf32>, vector<2x384xf32> -> vector<2x384xf32>
    %125 = vector.broadcast %1 : vector<1x384xf32> to vector<2x384xf32>
    %126 = arith.addf %124, %125 : vector<2x384xf32>
    %127 = vector.extract_strided_slice %126 {offsets = [0, 0], sizes = [2, 8], strides = [1, 1]} : vector<2x384xf32> to vector<2x8xf32>
    %128 = arith.negf %127 : vector<2x8xf32>
    %129 = math.exp %128 : vector<2x8xf32>
    %cst_27 = arith.constant 1.000000e+00 : f32
    %130 = vector.broadcast %cst_27 : f32 to vector<2x8xf32>
    %131 = arith.addf %130, %129 : vector<2x8xf32>
    %132 = arith.divf %130, %131 : vector<2x8xf32>
    %133 = vector.extract_strided_slice %126 {offsets = [0, 128], sizes = [2, 8], strides = [1, 1]} : vector<2x384xf32> to vector<2x8xf32>
    %134 = arith.negf %133 : vector<2x8xf32>
    %135 = math.exp %134 : vector<2x8xf32>
    %cst_28 = arith.constant 1.000000e+00 : f32
    %136 = vector.broadcast %cst_28 : f32 to vector<2x8xf32>
    %137 = arith.addf %136, %135 : vector<2x8xf32>
    %138 = arith.divf %136, %137 : vector<2x8xf32>
    %139 = vector.extract_strided_slice %126 {offsets = [0, 256], sizes = [2, 8], strides = [1, 1]} : vector<2x384xf32> to vector<2x8xf32>
    %140 = arith.mulf %132, %139 : vector<2x8xf32>
    %141 = vector.broadcast %2 : vector<1x8xf32> to vector<2x8xf32>
    %142 = arith.addf %141, %140 : vector<2x8xf32>
    %143 = math.tanh %142 : vector<2x8xf32>
    %144 = arith.subf %122, %143 : vector<2x8xf32>
    %145 = arith.mulf %138, %144 : vector<2x8xf32>
    %146 = arith.addf %143, %145 : vector<2x8xf32>
    %c0_29 = arith.constant 0 : index
    %c40 = arith.constant 40 : index
    %147 = vector.load %arg4[%c0_29, %c40] : memref<2x64xf32, #tpu.memory_space<vmem>>, vector<2x8xf32>
    tpu.vector_store %arg4[%c0_29, %c40], %146 {strides = array<i32>} : memref<2x64xf32, #tpu.memory_space<vmem>>, vector<2x8xf32>,
    %cst_30 = arith.constant dense<0.000000e+00> : vector<2x384xf32>
    %148 = tpu.matmul %146, %0, %cst_30 {dimension_numbers = #tpu.dot_dimension_numbers<[1], [0], [0], [1], [0, 0, 1, 1], [], []>} : vector<2x8xf32>, vector<8x384xf32>, vector<2x384xf32> -> vector<2x384xf32>
    %149 = vector.broadcast %1 : vector<1x384xf32> to vector<2x384xf32>
    %150 = arith.addf %148, %149 : vector<2x384xf32>
    %151 = vector.extract_strided_slice %150 {offsets = [0, 0], sizes = [2, 8], strides = [1, 1]} : vector<2x384xf32> to vector<2x8xf32>
    %152 = arith.negf %151 : vector<2x8xf32>
    %153 = math.exp %152 : vector<2x8xf32>
    %cst_31 = arith.constant 1.000000e+00 : f32
    %154 = vector.broadcast %cst_31 : f32 to vector<2x8xf32>
    %155 = arith.addf %154, %153 : vector<2x8xf32>
    %156 = arith.divf %154, %155 : vector<2x8xf32>
    %157 = vector.extract_strided_slice %150 {offsets = [0, 128], sizes = [2, 8], strides = [1, 1]} : vector<2x384xf32> to vector<2x8xf32>
    %158 = arith.negf %157 : vector<2x8xf32>
    %159 = math.exp %158 : vector<2x8xf32>
    %cst_32 = arith.constant 1.000000e+00 : f32
    %160 = vector.broadcast %cst_32 : f32 to vector<2x8xf32>
    %161 = arith.addf %160, %159 : vector<2x8xf32>
    %162 = arith.divf %160, %161 : vector<2x8xf32>
    %163 = vector.extract_strided_slice %150 {offsets = [0, 256], sizes = [2, 8], strides = [1, 1]} : vector<2x384xf32> to vector<2x8xf32>
    %164 = arith.mulf %156, %163 : vector<2x8xf32>
    %165 = vector.broadcast %2 : vector<1x8xf32> to vector<2x8xf32>
    %166 = arith.addf %165, %164 : vector<2x8xf32>
    %167 = math.tanh %166 : vector<2x8xf32>
    %168 = arith.subf %146, %167 : vector<2x8xf32>
    %169 = arith.mulf %162, %168 : vector<2x8xf32>
    %170 = arith.addf %167, %169 : vector<2x8xf32>
    %c0_33 = arith.constant 0 : index
    %c48 = arith.constant 48 : index
    %171 = vector.load %arg4[%c0_33, %c48] : memref<2x64xf32, #tpu.memory_space<vmem>>, vector<2x8xf32>
    tpu.vector_store %arg4[%c0_33, %c48], %170 {strides = array<i32>} : memref<2x64xf32, #tpu.memory_space<vmem>>, vector<2x8xf32>,
    %cst_34 = arith.constant dense<0.000000e+00> : vector<2x384xf32>
    %172 = tpu.matmul %170, %0, %cst_34 {dimension_numbers = #tpu.dot_dimension_numbers<[1], [0], [0], [1], [0, 0, 1, 1], [], []>} : vector<2x8xf32>, vector<8x384xf32>, vector<2x384xf32> -> vector<2x384xf32>
    %173 = vector.broadcast %1 : vector<1x384xf32> to vector<2x384xf32>
    %174 = arith.addf %172, %173 : vector<2x384xf32>
    %175 = vector.extract_strided_slice %174 {offsets = [0, 0], sizes = [2, 8], strides = [1, 1]} : vector<2x384xf32> to vector<2x8xf32>
    %176 = arith.negf %175 : vector<2x8xf32>
    %177 = math.exp %176 : vector<2x8xf32>
    %cst_35 = arith.constant 1.000000e+00 : f32
    %178 = vector.broadcast %cst_35 : f32 to vector<2x8xf32>
    %179 = arith.addf %178, %177 : vector<2x8xf32>
    %180 = arith.divf %178, %179 : vector<2x8xf32>
    %181 = vector.extract_strided_slice %174 {offsets = [0, 128], sizes = [2, 8], strides = [1, 1]} : vector<2x384xf32> to vector<2x8xf32>
    %182 = arith.negf %181 : vector<2x8xf32>
    %183 = math.exp %182 : vector<2x8xf32>
    %cst_36 = arith.constant 1.000000e+00 : f32
    %184 = vector.broadcast %cst_36 : f32 to vector<2x8xf32>
    %185 = arith.addf %184, %183 : vector<2x8xf32>
    %186 = arith.divf %184, %185 : vector<2x8xf32>
    %187 = vector.extract_strided_slice %174 {offsets = [0, 256], sizes = [2, 8], strides = [1, 1]} : vector<2x384xf32> to vector<2x8xf32>
    %188 = arith.mulf %180, %187 : vector<2x8xf32>
    %189 = vector.broadcast %2 : vector<1x8xf32> to vector<2x8xf32>
    %190 = arith.addf %189, %188 : vector<2x8xf32>
    %191 = math.tanh %190 : vector<2x8xf32>
    %192 = arith.subf %170, %191 : vector<2x8xf32>
    %193 = arith.mulf %186, %192 : vector<2x8xf32>
    %194 = arith.addf %191, %193 : vector<2x8xf32>
    %c0_37 = arith.constant 0 : index
    %c56 = arith.constant 56 : index
    %195 = vector.load %arg4[%c0_37, %c56] : memref<2x64xf32, #tpu.memory_space<vmem>>, vector<2x8xf32>
    tpu.vector_store %arg4[%c0_37, %c56], %194 {strides = array<i32>} : memref<2x64xf32, #tpu.memory_space<vmem>>, vector<2x8xf32>,
    %c0_38 = arith.constant 0 : index
    %c0_39 = arith.constant 0 : index
    %196 = vector.load %arg4[%c0_38, %c0_39] : memref<2x64xf32, #tpu.memory_space<vmem>>, vector<2x64xf32>
    %c0_40 = arith.constant 0 : index
    %c0_41 = arith.constant 0 : index
    %197 = vector.load %arg2[%c0_40, %c0_41] : memref<65x512xf32, #tpu.memory_space<vmem>>, vector<64x512xf32>
    %cst_42 = arith.constant dense<0.000000e+00> : vector<2x512xf32>
    %198 = tpu.matmul %196, %197, %cst_42 {dimension_numbers = #tpu.dot_dimension_numbers<[1], [0], [0], [1], [0, 0, 1, 1], [], []>} : vector<2x64xf32>, vector<64x512xf32>, vector<2x512xf32> -> vector<2x512xf32>
    %c64 = arith.constant 64 : index
    %c0_43 = arith.constant 0 : index
    %199 = vector.load %arg2[%c64, %c0_43] : memref<65x512xf32, #tpu.memory_space<vmem>>, vector<1x512xf32>
    %200 = vector.broadcast %199 : vector<1x512xf32> to vector<2x512xf32>
    %201 = arith.addf %198, %200 : vector<2x512xf32>
    %c0_44 = arith.constant 0 : index
    %c0_45 = arith.constant 0 : index
    %202 = vector.load %arg3[%c0_44, %c0_45] : memref<2x512xf32, #tpu.memory_space<vmem>>, vector<2x512xf32>
    tpu.vector_store %arg3[%c0_44, %c0_45], %201 {strides = array<i32>} : memref<2x512xf32, #tpu.memory_space<vmem>>, vector<2x512xf32>,
    return
  }
}

</mosaic_0001>

<llo_original>
// kernel: tpu_custom_call.1
$region0: #{tpu_custom_call.1}
  #allocation0 [shape = 'u32[]', space=smem, size = 0x4, offset = 0x4, fixed_abs, tag = 'smem constant byte address 0x4 - core index']
  #allocation1 [shape = 'u32[144,128]{1,0:T(1,128)}', space=vmem, size = 0x12000, scoped, tag = 'internal scratch']
  #allocation2 [shape = 'f32[2,64]{1,0:T(2,128)}', space=vmem, size = 0x400, scoped, tag = 'scratch operand']
  %s0 = inlined_call_operand.hbm [shape: f32[2,8], index: 0, kind: input, shape index: {}]
  %s1 = inlined_call_operand.hbm [shape: f32[10,384], index: 1, kind: input, shape index: {}]
  %s2 = inlined_call_operand.hbm [shape: f32[65,512], index: 2, kind: input, shape index: {}]
  %s3 = inlined_call_operand.hbm [shape: f32[2,512], index: 3, kind: output, shape index: {}]
  %s4 = sld [smem:[#allocation0]]
  $region34: #{tpu_custom_call.1} parent=0
    _
  %s6 = ssub.s32 1, %s4
  %s7 = scalar_select 0, %s6, %s4
  $region1: #{tpu_custom_call.1} parent=0
    #allocation3 [shape = 'u8[1024]{0}', space=vmem, size = 0x400, scoped, tag = 'input window, operand 0, single buffered']
    #allocation4 [shape = 's32[1]{0}', space=sflag, size = 0x4, scoped, tag = 'scoped memory for tpu_custom_call.1']
    #allocation5 [shape = 's32[1]{0}', space=sflag, size = 0x4, scoped, tag = 'scoped memory for tpu_custom_call.1']
    #allocation6 [shape = 'u8[24576]{0}', space=vmem, size = 0x6000, scoped, tag = 'input window, operand 1, single buffered']
    #allocation7 [shape = 's32[1]{0}', space=sflag, size = 0x4, scoped, tag = 'scoped memory for tpu_custom_call.1']
    #allocation8 [shape = 'u8[147456]{0}', space=vmem, size = 0x24000, scoped, tag = 'input window, operand 2, single buffered']
    #allocation9 [shape = 'u8[4096]{0}', space=vmem, size = 0x1000, scoped, tag = 'output window, operand 0, single buffered']
    %8 = vsyncpa [#allocation4], 0
    %9 = vsyncpa [#allocation7], 0
    %10 = vsyncpa [#allocation5], 0
    // Predicated region
    $region2: #{tpu_custom_call.1} parent=1 // pred_check
      _
    $region3: #{tpu_custom_call.1} parent=1 // pred_check_branch
      %12 = sbr.rel (0) target = $region5
    $region4: #{tpu_custom_call.1} parent=1 // pred_region
      %s14 = ssub.s32 32, 32
      %15 = vsyncadd [#allocation4], %s14
      %s17 = sshll.u32 [#allocation3], 4
      %s18 = int_to_ptr.vmem [resolvable:$true] %s17
      %20 = dma.hbm_to_vmem [thread:$0]  %s0, 32, %s18, [#allocation4]
    $region5: #{tpu_custom_call.1} parent=1 // pred_fallthru
      _
    // Predicated region
    $region6: #{tpu_custom_call.1} parent=1 // pred_check
      _
    $region7: #{tpu_custom_call.1} parent=1 // pred_check_branch
      %22 = sbr.rel (0) target = $region9
    $region8: #{tpu_custom_call.1} parent=1 // pred_region
      %s24 = ssub.s32 768, 768
      %25 = vsyncadd [#allocation7], %s24
      %s26 = sshll.u32 [#allocation6], 4
      %s27 = int_to_ptr.vmem [resolvable:$true] %s26
      %32 = dma.hbm_to_vmem [thread:$0]  %s1, 768, %s27, [#allocation7], 384, 384, 24
    $region9: #{tpu_custom_call.1} parent=1 // pred_fallthru
      _
    // Predicated region
    $region10: #{tpu_custom_call.1} parent=1 // pred_check
      _
    $region11: #{tpu_custom_call.1} parent=1 // pred_check_branch
      %34 = sbr.rel (0) target = $region13
    $region12: #{tpu_custom_call.1} parent=1 // pred_region
      %s36 = ssub.s32 4608, 4608
      %37 = vsyncadd [#allocation7], %s36
      %s38 = sshll.u32 [#allocation8], 4
      %s39 = int_to_ptr.vmem [resolvable:$true] %s38
      %44 = dma.hbm_to_vmem [thread:$0]  %s2, 4608, %s39, [#allocation7], 512, 512, 32
    $region13: #{tpu_custom_call.1} parent=1 // pred_fallthru
      _
    // Predicated region
    $region14: #{tpu_custom_call.1} parent=1 // pred_check
      _
    $region15: #{tpu_custom_call.1} parent=1 // pred_check_branch
      %46 = sbr.rel (0) target = $region17
    $region16: #{tpu_custom_call.1} parent=1 // pred_region
      %47 = dma.done [#allocation4], 32
    $region17: #{tpu_custom_call.1} parent=1 // pred_fallthru
      _
    // Predicated region
    $region18: #{tpu_custom_call.1} parent=1 // pred_check
      _
    $region19: #{tpu_custom_call.1} parent=1 // pred_check_branch
      %49 = sbr.rel (0) target = $region21
    $region20: #{tpu_custom_call.1} parent=1 // pred_region
      %50 = dma.done [#allocation7], 768
    $region21: #{tpu_custom_call.1} parent=1 // pred_fallthru
      _
    // Predicated region
    $region22: #{tpu_custom_call.1} parent=1 // pred_check
      _
    $region23: #{tpu_custom_call.1} parent=1 // pred_check_branch
      %52 = sbr.rel (0) target = $region25
    $region24: #{tpu_custom_call.1} parent=1 // pred_region
      %53 = dma.done [#allocation7], 4608
    $region25: #{tpu_custom_call.1} parent=1 // pred_fallthru
      _
    %v54 = vld [vmem:[#allocation6] sm:$0xff]
    %v55 = vld [vmem:[#allocation6 + $0x8] sm:$0xff]
    %v56 = vld [vmem:[#allocation6 + $0x10] sm:$0xff]
    %s57 = scalar_lea.vmem [#allocation6], 24
    %v58 = vld [vmem:[%s57] ss:$8 sm:$0x7]
    %v59 = vld [vmem:[#allocation6 + $0x19] ss:$0 sm:$0xff]
    %v60 = vld [vmem:[#allocation3] sm:$0x3]
    %v62 = vlaneseq
    %v63 = vshrl.u32 %v62, 7
    %v64 = vsub.s32 0, %v63
    %v65 = vrot.slane %v58, %v64
    %v66 = vlaneseq
    %v67 = vshrl.u32 %v66, 7
    %v68 = vsub.s32 1, %v67
    %v69 = vrot.slane %v58, %v68
    %v70 = vlaneseq
    %v71 = vshrl.u32 %v70, 7
    %v72 = vsub.s32 2, %v71
    %v73 = vrot.slane %v58, %v72
    %vm77 = vcmask 64512
    %v79 = vsel %vm77, %v60, 0
    %81 = vmatprep.subr.mxu0 %v55
    %82 = vmatpush1.msra.mxu0 %v54
    %83 = vmatprep.subr.mxu0 0.0
    %84 = vmatpush1.msra.mxu0 0.0
    %85 = vmatprep.subr.mxu0 0.0
    %86 = vmatpush1.msra.mxu0 0.0
    %87 = vmatprep.subr.mxu0 0.0
    %88 = vmatpush1.msra.mxu0 0.0
    %89 = vmatprep.subr.mxu0 0.0
    %90 = vmatpush1.msra.mxu0 0.0
    %91 = vmatprep.subr.mxu0 0.0
    %92 = vmatpush1.msra.mxu0 0.0
    %93 = vmatprep.subr.mxu0 0.0
    %94 = vmatpush1.msra.mxu0 0.0
    %95 = vmatprep.subr.mxu0 0.0
    %96 = vmatpush1.msra.mxu0 0.0
    %97 = vmatprep.subr.mxu0 0.0
    %98 = vmatpush1.msra.mxu0 0.0
    %99 = vmatprep.subr.mxu0 0.0
    %100 = vmatpush1.msra.mxu0 0.0
    %101 = vmatprep.subr.mxu0 0.0
    %102 = vmatpush1.msra.mxu0 0.0
    %103 = vmatprep.subr.mxu0 0.0
    %104 = vmatpush1.msra.mxu0 0.0
    %105 = vmatprep.subr.mxu0 0.0
    %106 = vmatpush1.msra.mxu0 0.0
    %107 = vmatprep.subr.mxu0 0.0
    %108 = vmatpush1.msra.mxu0 0.0
    %109 = vmatprep.subr.mxu0 0.0
    %110 = vmatpush1.msra.mxu0 0.0
    %111 = vmatprep.subr.mxu0 0.0
    %112 = vmatpush1.msra.mxu0 0.0
    %113 = vmatprep.subr.mxu0 0.0
    %114 = vmatpush1.msra.mxu0 0.0
    %115 = vmatprep.subr.mxu0 0.0
    %116 = vmatpush1.msra.mxu0 0.0
    %117 = vmatprep.subr.mxu0 0.0
    %118 = vmatpush1.msra.mxu0 0.0
    %119 = vmatprep.subr.mxu0 0.0
    %120 = vmatpush1.msra.mxu0 0.0
    %121 = vmatprep.subr.mxu0 0.0
    %122 = vmatpush1.msra.mxu0 0.0
    %123 = vmatprep.subr.mxu0 0.0
    %124 = vmatpush1.msra.mxu0 0.0
    %125 = vmatprep.subr.mxu0 0.0
    %126 = vmatpush1.msra.mxu0 0.0
    %127 = vmatprep.subr.mxu0 0.0
    %128 = vmatpush1.msra.mxu0 0.0
    %129 = vmatprep.subr.mxu0 0.0
    %130 = vmatpush1.msra.mxu0 0.0
    %131 = vmatprep.subr.mxu0 0.0
    %132 = vmatpush1.msra.mxu0 0.0
    %133 = vmatprep.subr.mxu0 0.0
    %134 = vmatpush1.msra.mxu0 0.0
    %135 = vmatprep.subr.mxu0 0.0
    %136 = vmatpush1.msra.mxu0 0.0
    %137 = vmatprep.subr.mxu0 0.0
    %138 = vmatpush1.msra.mxu0 0.0
    %139 = vmatprep.subr.mxu0 0.0
    %140 = vmatpush1.msra.mxu0 0.0
    %141 = vmatprep.subr.mxu0 0.0
    %142 = vmatpush1.msra.mxu0 0.0
    %143 = vmatprep.subr.mxu0 0.0
    %144 = vmatpush1.msra.mxu0 0.0
    %145 = vmatprep.mubr.f32.mxu0 0.0
    %146 = vmatmul.mubr.f32.gmra.mrb[0].mxu0 %v79
    %v147 = vpop.f32.mrb[0].mxu0
    %v148 = vadd.f32 %v65, %v147
    %v149 = vpop.f32.mrb[0].mxu0
    %v150 = vadd.f32 %v69, %v149
    %151 = vdwg.mxu0
    %152 = vmatprep.subr.mxu0 0.0
    %153 = vmatpush1.msra.mxu0 %v56
    %154 = vmatprep.subr.mxu0 0.0
    %155 = vmatpush1.msra.mxu0 0.0
    %156 = vmatprep.subr.mxu0 0.0
    %157 = vmatpush1.msra.mxu0 0.0
    %158 = vmatprep.subr.mxu0 0.0
    %159 = vmatpush1.msra.mxu0 0.0
    %160 = vmatprep.subr.mxu0 0.0
    %161 = vmatpush1.msra.mxu0 0.0
    %162 = vmatprep.subr.mxu0 0.0
    %163 = vmatpush1.msra.mxu0 0.0
    %164 = vmatprep.subr.mxu0 0.0
    %165 = vmatpush1.msra.mxu0 0.0
    %166 = vmatprep.subr.mxu0 0.0
    %167 = vmatpush1.msra.mxu0 0.0
    %168 = vmatprep.subr.mxu0 0.0
    %169 = vmatpush1.msra.mxu0 0.0
    %170 = vmatprep.subr.mxu0 0.0
    %171 = vmatpush1.msra.mxu0 0.0
    %172 = vmatprep.subr.mxu0 0.0
    %173 = vmatpush1.msra.mxu0 0.0
    %174 = vmatprep.subr.mxu0 0.0
    %175 = vmatpush1.msra.mxu0 0.0
    %176 = vmatprep.subr.mxu0 0.0
    %177 = vmatpush1.msra.mxu0 0.0
    %178 = vmatprep.subr.mxu0 0.0
    %179 = vmatpush1.msra.mxu0 0.0
    %180 = vmatprep.subr.mxu0 0.0
    %181 = vmatpush1.msra.mxu0 0.0
    %182 = vmatprep.subr.mxu0 0.0
    %183 = vmatpush1.msra.mxu0 0.0
    %184 = vmatprep.subr.mxu0 0.0
    %185 = vmatpush1.msra.mxu0 0.0
    %186 = vmatprep.subr.mxu0 0.0
    %187 = vmatpush1.msra.mxu0 0.0
    %188 = vmatprep.subr.mxu0 0.0
    %189 = vmatpush1.msra.mxu0 0.0
    %190 = vmatprep.subr.mxu0 0.0
    %191 = vmatpush1.msra.mxu0 0.0
    %192 = vmatprep.subr.mxu0 0.0
    %193 = vmatpush1.msra.mxu0 0.0
    %194 = vmatprep.subr.mxu0 0.0
    %195 = vmatpush1.msra.mxu0 0.0
    %196 = vmatprep.subr.mxu0 0.0
    %197 = vmatpush1.msra.mxu0 0.0
    %198 = vmatprep.subr.mxu0 0.0
    %199 = vmatpush1.msra.mxu0 0.0
    %200 = vmatprep.subr.mxu0 0.0
    %201 = vmatpush1.msra.mxu0 0.0
    %202 = vmatprep.subr.mxu0 0.0
    %203 = vmatpush1.msra.mxu0 0.0
    %204 = vmatprep.subr.mxu0 0.0
    %205 = vmatpush1.msra.mxu0 0.0
    %206 = vmatprep.subr.mxu0 0.0
    %207 = vmatpush1.msra.mxu0 0.0
    %208 = vmatprep.subr.mxu0 0.0
    %209 = vmatpush1.msra.mxu0 0.0
    %210 = vmatprep.subr.mxu0 0.0
    %211 = vmatpush1.msra.mxu0 0.0
    %212 = vmatprep.subr.mxu0 0.0
    %213 = vmatpush1.msra.mxu0 0.0
    %214 = vmatprep.subr.mxu0 0.0
    %215 = vmatpush1.msra.mxu0 0.0
    %216 = vmatprep.mubr.f32.mxu0 0.0
    %217 = vmatmul.mubr.f32.gmra.mrb[0].mxu0 %v79
    %v218 = vpop.f32.mrb[0].mxu0
    %v219 = vadd.f32 %v73, %v218
    %v220 = vpop.f32.mrb[0].mxu0
    %221 = vdwg.mxu0
    %v222 = vxor.u32 %v148, 2147483648
    %v223 = vmul.f32 %v222, 1.442695
    %v224 = vpow.pop %v223
    %v225 = vadd.f32 %v224, 1.0
    %v226 = vrcp.pop %v225
    %v227 = vmul.f32 1.0, %v226
    %v228 = vxor.u32 %v150, 2147483648
    %v229 = vmul.f32 %v228, 1.442695
    %v230 = vpow.pop %v229
    %v231 = vadd.f32 %v230, 1.0
    %v232 = vrcp.pop %v231
    %v233 = vmul.f32 1.0, %v232
    %v234 = vmul.f32 %v227, %v219
    %v235 = vadd.f32 %v59, %v234
    %v236 = vtanh.pop %v235
    %v237 = vsub.f32 %v60, %v236
    %v238 = vmul.f32 %v233, %v237
    %v239 = vadd.f32 %v236, %v238
    %vm240 = vcmask 58368
    %241 = vst.msk [vmem:[#allocation2] sm:$0x3] %vm240, %v239
    %v243 = vsel %vm77, %v239, 0
    %245 = vmatprep.subr.mxu0 %v55
    %246 = vmatpush1.msra.mxu0 %v54
    %247 = vmatprep.subr.mxu0 0.0
    %248 = vmatpush1.msra.mxu0 0.0
    %249 = vmatprep.subr.mxu0 0.0
    %250 = vmatpush1.msra.mxu0 0.0
    %251 = vmatprep.subr.mxu0 0.0
    %252 = vmatpush1.msra.mxu0 0.0
    %253 = vmatprep.subr.mxu0 0.0
    %254 = vmatpush1.msra.mxu0 0.0
    %255 = vmatprep.subr.mxu0 0.0
    %256 = vmatpush1.msra.mxu0 0.0
    %257 = vmatprep.subr.mxu0 0.0
    %258 = vmatpush1.msra.mxu0 0.0
    %259 = vmatprep.subr.mxu0 0.0
    %260 = vmatpush1.msra.mxu0 0.0
    %261 = vmatprep.subr.mxu0 0.0
    %262 = vmatpush1.msra.mxu0 0.0
    %263 = vmatprep.subr.mxu0 0.0
    %264 = vmatpush1.msra.mxu0 0.0
    %265 = vmatprep.subr.mxu0 0.0
    %266 = vmatpush1.msra.mxu0 0.0
    %267 = vmatprep.subr.mxu0 0.0
    %268 = vmatpush1.msra.mxu0 0.0
    %269 = vmatprep.subr.mxu0 0.0
    %270 = vmatpush1.msra.mxu0 0.0
    %271 = vmatprep.subr.mxu0 0.0
    %272 = vmatpush1.msra.mxu0 0.0
    %273 = vmatprep.subr.mxu0 0.0
    %274 = vmatpush1.msra.mxu0 0.0
    %275 = vmatprep.subr.mxu0 0.0
    %276 = vmatpush1.msra.mxu0 0.0
    %277 = vmatprep.subr.mxu0 0.0
    %278 = vmatpush1.msra.mxu0 0.0
    %279 = vmatprep.subr.mxu0 0.0
    %280 = vmatpush1.msra.mxu0 0.0
    %281 = vmatprep.subr.mxu0 0.0
    %282 = vmatpush1.msra.mxu0 0.0
    %283 = vmatprep.subr.mxu0 0.0
    %284 = vmatpush1.msra.mxu0 0.0
    %285 = vmatprep.subr.mxu0 0.0
    %286 = vmatpush1.msra.mxu0 0.0
    %287 = vmatprep.subr.mxu0 0.0
    %288 = vmatpush1.msra.mxu0 0.0
    %289 = vmatprep.subr.mxu0 0.0
    %290 = vmatpush1.msra.mxu0 0.0
    %291 = vmatprep.subr.mxu0 0.0
    %292 = vmatpush1.msra.mxu0 0.0
    %293 = vmatprep.subr.mxu0 0.0
    %294 = vmatpush1.msra.mxu0 0.0
    %295 = vmatprep.subr.mxu0 0.0
    %296 = vmatpush1.msra.mxu0 0.0
    %297 = vmatprep.subr.mxu0 0.0
    %298 = vmatpush1.msra.mxu0 0.0
    %299 = vmatprep.subr.mxu0 0.0
    %300 = vmatpush1.msra.mxu0 0.0
    %301 = vmatprep.subr.mxu0 0.0
    %302 = vmatpush1.msra.mxu0 0.0
    %303 = vmatprep.subr.mxu0 0.0
    %304 = vmatpush1.msra.mxu0 0.0
    %305 = vmatprep.subr.mxu0 0.0
    %306 = vmatpush1.msra.mxu0 0.0
    %307 = vmatprep.subr.mxu0 0.0
    %308 = vmatpush1.msra.mxu0 0.0
    %309 = vmatprep.mubr.f32.mxu0 0.0
    %310 = vmatmul.mubr.f32.gmra.mrb[0].mxu0 %v243
    %v311 = vpop.f32.mrb[0].mxu0
    %v312 = vadd.f32 %v65, %v311
    %v313 = vpop.f32.mrb[0].mxu0
    %v314 = vadd.f32 %v69, %v313
    %315 = vdwg.mxu0
    %316 = vmatprep.subr.mxu0 0.0
    %317 = vmatpush1.msra.mxu0 %v56
    %318 = vmatprep.subr.mxu0 0.0
    %319 = vmatpush1.msra.mxu0 0.0
    %320 = vmatprep.subr.mxu0 0.0
    %321 = vmatpush1.msra.mxu0 0.0
    %322 = vmatprep.subr.mxu0 0.0
    %323 = vmatpush1.msra.mxu0 0.0
    %324 = vmatprep.subr.mxu0 0.0
    %325 = vmatpush1.msra.mxu0 0.0
    %326 = vmatprep.subr.mxu0 0.0
    %327 = vmatpush1.msra.mxu0 0.0
    %328 = vmatprep.subr.mxu0 0.0
    %329 = vmatpush1.msra.mxu0 0.0
    %330 = vmatprep.subr.mxu0 0.0
    %331 = vmatpush1.msra.mxu0 0.0
    %332 = vmatprep.subr.mxu0 0.0
    %333 = vmatpush1.msra.mxu0 0.0
    %334 = vmatprep.subr.mxu0 0.0
    %335 = vmatpush1.msra.mxu0 0.0
    %336 = vmatprep.subr.mxu0 0.0
    %337 = vmatpush1.msra.mxu0 0.0
    %338 = vmatprep.subr.mxu0 0.0
    %339 = vmatpush1.msra.mxu0 0.0
    %340 = vmatprep.subr.mxu0 0.0
    %341 = vmatpush1.msra.mxu0 0.0
    %342 = vmatprep.subr.mxu0 0.0
    %343 = vmatpush1.msra.mxu0 0.0
    %344 = vmatprep.subr.mxu0 0.0
    %345 = vmatpush1.msra.mxu0 0.0
    %346 = vmatprep.subr.mxu0 0.0
    %347 = vmatpush1.msra.mxu0 0.0
    %348 = vmatprep.subr.mxu0 0.0
    %349 = vmatpush1.msra.mxu0 0.0
    %350 = vmatprep.subr.mxu0 0.0
    %351 = vmatpush1.msra.mxu0 0.0
    %352 = vmatprep.subr.mxu0 0.0
    %353 = vmatpush1.msra.mxu0 0.0
    %354 = vmatprep.subr.mxu0 0.0
    %355 = vmatpush1.msra.mxu0 0.0
    %356 = vmatprep.subr.mxu0 0.0
    %357 = vmatpush1.msra.mxu0 0.0
    %358 = vmatprep.subr.mxu0 0.0
    %359 = vmatpush1.msra.mxu0 0.0
    %360 = vmatprep.subr.mxu0 0.0
    %361 = vmatpush1.msra.mxu0 0.0
    %362 = vmatprep.subr.mxu0 0.0
    %363 = vmatpush1.msra.mxu0 0.0
    %364 = vmatprep.subr.mxu0 0.0
    %365 = vmatpush1.msra.mxu0 0.0
    %366 = vmatprep.subr.mxu0 0.0
    %367 = vmatpush1.msra.mxu0 0.0
    %368 = vmatprep.subr.mxu0 0.0
    %369 = vmatpush1.msra.mxu0 0.0
    %370 = vmatprep.subr.mxu0 0.0
    %371 = vmatpush1.msra.mxu0 0.0
    %372 = vmatprep.subr.mxu0 0.0
    %373 = vmatpush1.msra.mxu0 0.0
    %374 = vmatprep.subr.mxu0 0.0
    %375 = vmatpush1.msra.mxu0 0.0
    %376 = vmatprep.subr.mxu0 0.0
    %377 = vmatpush1.msra.mxu0 0.0
    %378 = vmatprep.subr.mxu0 0.0
    %379 = vmatpush1.msra.mxu0 0.0
    %380 = vmatprep.mubr.f32.mxu0 0.0
    %381 = vmatmul.mubr.f32.gmra.mrb[0].mxu0 %v243
    %v382 = vpop.f32.mrb[0].mxu0
    %v383 = vadd.f32 %v73, %v382
    %v384 = vpop.f32.mrb[0].mxu0
    %385 = vdwg.mxu0
    %v386 = vxor.u32 %v312, 2147483648
    %v387 = vmul.f32 %v386, 1.442695
    %v388 = vpow.pop %v387
    %v389 = vadd.f32 %v388, 1.0
    %v390 = vrcp.pop %v389
    %v391 = vmul.f32 1.0, %v390
    %v392 = vxor.u32 %v314, 2147483648
    %v393 = vmul.f32 %v392, 1.442695
    %v394 = vpow.pop %v393
    %v395 = vadd.f32 %v394, 1.0
    %v396 = vrcp.pop %v395
    %v397 = vmul.f32 1.0, %v396
    %v398 = vmul.f32 %v391, %v383
    %v399 = vadd.f32 %v59, %v398
    %v400 = vtanh.pop %v399
    %v401 = vsub.f32 %v239, %v400
    %v402 = vmul.f32 %v397, %v401
    %v403 = vadd.f32 %v400, %v402
    %405 = vrot.lane.b32.xlu0 %v403, 8
    %v406 = vpop.permute.xlu0 %405
    %vm408 = vcmask 123968
    %409 = vst.msk [vmem:[#allocation2] sm:$0x3] %vm408, %v406
    %v410 = vsel %vm77, %v403, 0
    %412 = vmatprep.subr.mxu0 %v55
    %413 = vmatpush1.msra.mxu0 %v54
    %414 = vmatprep.subr.mxu0 0.0
    %415 = vmatpush1.msra.mxu0 0.0
    %416 = vmatprep.subr.mxu0 0.0
    %417 = vmatpush1.msra.mxu0 0.0
    %418 = vmatprep.subr.mxu0 0.0
    %419 = vmatpush1.msra.mxu0 0.0
    %420 = vmatprep.subr.mxu0 0.0
    %421 = vmatpush1.msra.mxu0 0.0
    %422 = vmatprep.subr.mxu0 0.0
    %423 = vmatpush1.msra.mxu0 0.0
    %424 = vmatprep.subr.mxu0 0.0
    %425 = vmatpush1.msra.mxu0 0.0
    %426 = vmatprep.subr.mxu0 0.0
    %427 = vmatpush1.msra.mxu0 0.0
    %428 = vmatprep.subr.mxu0 0.0
    %429 = vmatpush1.msra.mxu0 0.0
    %430 = vmatprep.subr.mxu0 0.0
    %431 = vmatpush1.msra.mxu0 0.0
    %432 = vmatprep.subr.mxu0 0.0
    %433 = vmatpush1.msra.mxu0 0.0
    %434 = vmatprep.subr.mxu0 0.0
    %435 = vmatpush1.msra.mxu0 0.0
    %436 = vmatprep.subr.mxu0 0.0
    %437 = vmatpush1.msra.mxu0 0.0
    %438 = vmatprep.subr.mxu0 0.0
    %439 = vmatpush1.msra.mxu0 0.0
    %440 = vmatprep.subr.mxu0 0.0
    %441 = vmatpush1.msra.mxu0 0.0
    %442 = vmatprep.subr.mxu0 0.0
    %443 = vmatpush1.msra.mxu0 0.0
    %444 = vmatprep.subr.mxu0 0.0
    %445 = vmatpush1.msra.mxu0 0.0
    %446 = vmatprep.subr.mxu0 0.0
    %447 = vmatpush1.msra.mxu0 0.0
    %448 = vmatprep.subr.mxu0 0.0
    %449 = vmatpush1.msra.mxu0 0.0
    %450 = vmatprep.subr.mxu0 0.0
    %451 = vmatpush1.msra.mxu0 0.0
    %452 = vmatprep.subr.mxu0 0.0
    %453 = vmatpush1.msra.mxu0 0.0
    %454 = vmatprep.subr.mxu0 0.0
    %455 = vmatpush1.msra.mxu0 0.0
    %456 = vmatprep.subr.mxu0 0.0
    %457 = vmatpush1.msra.mxu0 0.0
    %458 = vmatprep.subr.mxu0 0.0
    %459 = vmatpush1.msra.mxu0 0.0
    %460 = vmatprep.subr.mxu0 0.0
    %461 = vmatpush1.msra.mxu0 0.0
    %462 = vmatprep.subr.mxu0 0.0
    %463 = vmatpush1.msra.mxu0 0.0
    %464 = vmatprep.subr.mxu0 0.0
    %465 = vmatpush1.msra.mxu0 0.0
    %466 = vmatprep.subr.mxu0 0.0
    %467 = vmatpush1.msra.mxu0 0.0
    %468 = vmatprep.subr.mxu0 0.0
    %469 = vmatpush1.msra.mxu0 0.0
    %470 = vmatprep.subr.mxu0 0.0
    %471 = vmatpush1.msra.mxu0 0.0
    %472 = vmatprep.subr.mxu0 0.0
    %473 = vmatpush1.msra.mxu0 0.0
    %474 = vmatprep.subr.mxu0 0.0
    %475 = vmatpush1.msra.mxu0 0.0
    %476 = vmatprep.mubr.f32.mxu0 0.0
    %477 = vmatmul.mubr.f32.gmra.mrb[0].mxu0 %v410
    %v478 = vpop.f32.mrb[0].mxu0
    %v479 = vadd.f32 %v65, %v478
    %v480 = vpop.f32.mrb[0].mxu0
    %v481 = vadd.f32 %v69, %v480
    %482 = vdwg.mxu0
    %483 = vmatprep.subr.mxu0 0.0
    %484 = vmatpush1.msra.mxu0 %v56
    %485 = vmatprep.subr.mxu0 0.0
    %486 = vmatpush1.msra.mxu0 0.0
    %487 = vmatprep.subr.mxu0 0.0
    %488 = vmatpush1.msra.mxu0 0.0
    %489 = vmatprep.subr.mxu0 0.0
    %490 = vmatpush1.msra.mxu0 0.0
    %491 = vmatprep.subr.mxu0 0.0
    %492 = vmatpush1.msra.mxu0 0.0
    %493 = vmatprep.subr.mxu0 0.0
    %494 = vmatpush1.msra.mxu0 0.0
    %495 = vmatprep.subr.mxu0 0.0
    %496 = vmatpush1.msra.mxu0 0.0
    %497 = vmatprep.subr.mxu0 0.0
    %498 = vmatpush1.msra.mxu0 0.0
    %499 = vmatprep.subr.mxu0 0.0
    %500 = vmatpush1.msra.mxu0 0.0
    %501 = vmatprep.subr.mxu0 0.0
    %502 = vmatpush1.msra.mxu0 0.0
    %503 = vmatprep.subr.mxu0 0.0
    %504 = vmatpush1.msra.mxu0 0.0
    %505 = vmatprep.subr.mxu0 0.0
    %506 = vmatpush1.msra.mxu0 0.0
    %507 = vmatprep.subr.mxu0 0.0
    %508 = vmatpush1.msra.mxu0 0.0
    %509 = vmatprep.subr.mxu0 0.0
    %510 = vmatpush1.msra.mxu0 0.0
    %511 = vmatprep.subr.mxu0 0.0
    %512 = vmatpush1.msra.mxu0 0.0
    %513 = vmatprep.subr.mxu0 0.0
    %514 = vmatpush1.msra.mxu0 0.0
    %515 = vmatprep.subr.mxu0 0.0
    %516 = vmatpush1.msra.mxu0 0.0
    %517 = vmatprep.subr.mxu0 0.0
    %518 = vmatpush1.msra.mxu0 0.0
    %519 = vmatprep.subr.mxu0 0.0
    %520 = vmatpush1.msra.mxu0 0.0
    %521 = vmatprep.subr.mxu0 0.0
    %522 = vmatpush1.msra.mxu0 0.0
    %523 = vmatprep.subr.mxu0 0.0
    %524 = vmatpush1.msra.mxu0 0.0
    %525 = vmatprep.subr.mxu0 0.0
    %526 = vmatpush1.msra.mxu0 0.0
    %527 = vmatprep.subr.mxu0 0.0
    %528 = vmatpush1.msra.mxu0 0.0
    %529 = vmatprep.subr.mxu0 0.0
    %530 = vmatpush1.msra.mxu0 0.0
    %531 = vmatprep.subr.mxu0 0.0
    %532 = vmatpush1.msra.mxu0 0.0
    %533 = vmatprep.subr.mxu0 0.0
    %534 = vmatpush1.msra.mxu0 0.0
    %535 = vmatprep.subr.mxu0 0.0
    %536 = vmatpush1.msra.mxu0 0.0
    %537 = vmatprep.subr.mxu0 0.0
    %538 = vmatpush1.msra.mxu0 0.0
    %539 = vmatprep.subr.mxu0 0.0
    %540 = vmatpush1.msra.mxu0 0.0
    %541 = vmatprep.subr.mxu0 0.0
    %542 = vmatpush1.msra.mxu0 0.0
    %543 = vmatprep.subr.mxu0 0.0
    %544 = vmatpush1.msra.mxu0 0.0
    %545 = vmatprep.subr.mxu0 0.0
    %546 = vmatpush1.msra.mxu0 0.0
    %547 = vmatprep.mubr.f32.mxu0 0.0
    %548 = vmatmul.mubr.f32.gmra.mrb[0].mxu0 %v410
    %v549 = vpop.f32.mrb[0].mxu0
    %v550 = vadd.f32 %v73, %v549
    %v551 = vpop.f32.mrb[0].mxu0
    %552 = vdwg.mxu0
    %v553 = vxor.u32 %v479, 2147483648
    %v554 = vmul.f32 %v553, 1.442695
    %v555 = vpow.pop %v554
    %v556 = vadd.f32 %v555, 1.0
    %v557 = vrcp.pop %v556
    %v558 = vmul.f32 1.0, %v557
    %v559 = vxor.u32 %v481, 2147483648
    %v560 = vmul.f32 %v559, 1.442695
    %v561 = vpow.pop %v560
    %v562 = vadd.f32 %v561, 1.0
    %v563 = vrcp.pop %v562
    %v564 = vmul.f32 1.0, %v563
    %v565 = vmul.f32 %v558, %v550
    %v566 = vadd.f32 %v59, %v565
    %v567 = vtanh.pop %v566
    %v568 = vsub.f32 %v403, %v567
    %v569 = vmul.f32 %v564, %v568
    %v570 = vadd.f32 %v567, %v569
    %572 = vrot.lane.b32.xlu0 %v570, 16
    %v573 = vpop.permute.xlu0 %572
    %vm575 = vcmask 189568
    %576 = vst.msk [vmem:[#allocation2] sm:$0x3] %vm575, %v573
    %v577 = vsel %vm77, %v570, 0
    %579 = vmatprep.subr.mxu0 %v55
    %580 = vmatpush1.msra.mxu0 %v54
    %581 = vmatprep.subr.mxu0 0.0
    %582 = vmatpush1.msra.mxu0 0.0
    %583 = vmatprep.subr.mxu0 0.0
    %584 = vmatpush1.msra.mxu0 0.0
    %585 = vmatprep.subr.mxu0 0.0
    %586 = vmatpush1.msra.mxu0 0.0
    %587 = vmatprep.subr.mxu0 0.0
    %588 = vmatpush1.msra.mxu0 0.0
    %589 = vmatprep.subr.mxu0 0.0
    %590 = vmatpush1.msra.mxu0 0.0
    %591 = vmatprep.subr.mxu0 0.0
    %592 = vmatpush1.msra.mxu0 0.0
    %593 = vmatprep.subr.mxu0 0.0
    %594 = vmatpush1.msra.mxu0 0.0
    %595 = vmatprep.subr.mxu0 0.0
    %596 = vmatpush1.msra.mxu0 0.0
    %597 = vmatprep.subr.mxu0 0.0
    %598 = vmatpush1.msra.mxu0 0.0
    %599 = vmatprep.subr.mxu0 0.0
    %600 = vmatpush1.msra.mxu0 0.0
    %601 = vmatprep.subr.mxu0 0.0
    %602 = vmatpush1.msra.mxu0 0.0
    %603 = vmatprep.subr.mxu0 0.0
    %604 = vmatpush1.msra.mxu0 0.0
    %605 = vmatprep.subr.mxu0 0.0
    %606 = vmatpush1.msra.mxu0 0.0
    %607 = vmatprep.subr.mxu0 0.0
    %608 = vmatpush1.msra.mxu0 0.0
    %609 = vmatprep.subr.mxu0 0.0
    %610 = vmatpush1.msra.mxu0 0.0
    %611 = vmatprep.subr.mxu0 0.0
    %612 = vmatpush1.msra.mxu0 0.0
    %613 = vmatprep.subr.mxu0 0.0
    %614 = vmatpush1.msra.mxu0 0.0
    %615 = vmatprep.subr.mxu0 0.0
    %616 = vmatpush1.msra.mxu0 0.0
    %617 = vmatprep.subr.mxu0 0.0
    %618 = vmatpush1.msra.mxu0 0.0
    %619 = vmatprep.subr.mxu0 0.0
    %620 = vmatpush1.msra.mxu0 0.0
    %621 = vmatprep.subr.mxu0 0.0
    %622 = vmatpush1.msra.mxu0 0.0
    %623 = vmatprep.subr.mxu0 0.0
    %624 = vmatpush1.msra.mxu0 0.0
    %625 = vmatprep.subr.mxu0 0.0
    %626 = vmatpush1.msra.mxu0 0.0
    %627 = vmatprep.subr.mxu0 0.0
    %628 = vmatpush1.msra.mxu0 0.0
    %629 = vmatprep.subr.mxu0 0.0
    %630 = vmatpush1.msra.mxu0 0.0
    %631 = vmatprep.subr.mxu0 0.0
    %632 = vmatpush1.msra.mxu0 0.0
    %633 = vmatprep.subr.mxu0 0.0
    %634 = vmatpush1.msra.mxu0 0.0
    %635 = vmatprep.subr.mxu0 0.0
    %636 = vmatpush1.msra.mxu0 0.0
    %637 = vmatprep.subr.mxu0 0.0
    %638 = vmatpush1.msra.mxu0 0.0
    %639 = vmatprep.subr.mxu0 0.0
    %640 = vmatpush1.msra.mxu0 0.0
    %641 = vmatprep.subr.mxu0 0.0
    %642 = vmatpush1.msra.mxu0 0.0
    %643 = vmatprep.mubr.f32.mxu0 0.0
    %644 = vmatmul.mubr.f32.gmra.mrb[0].mxu0 %v577
    %v645 = vpop.f32.mrb[0].mxu0
    %v646 = vadd.f32 %v65, %v645
    %v647 = vpop.f32.mrb[0].mxu0
    %v648 = vadd.f32 %v69, %v647
    %649 = vdwg.mxu0
    %650 = vmatprep.subr.mxu0 0.0
    %651 = vmatpush1.msra.mxu0 %v56
    %652 = vmatprep.subr.mxu0 0.0
    %653 = vmatpush1.msra.mxu0 0.0
    %654 = vmatprep.subr.mxu0 0.0
    %655 = vmatpush1.msra.mxu0 0.0
    %656 = vmatprep.subr.mxu0 0.0
    %657 = vmatpush1.msra.mxu0 0.0
    %658 = vmatprep.subr.mxu0 0.0
    %659 = vmatpush1.msra.mxu0 0.0
    %660 = vmatprep.subr.mxu0 0.0
    %661 = vmatpush1.msra.mxu0 0.0
    %662 = vmatprep.subr.mxu0 0.0
    %663 = vmatpush1.msra.mxu0 0.0
    %664 = vmatprep.subr.mxu0 0.0
    %665 = vmatpush1.msra.mxu0 0.0
    %666 = vmatprep.subr.mxu0 0.0
    %667 = vmatpush1.msra.mxu0 0.0
    %668 = vmatprep.subr.mxu0 0.0
    %669 = vmatpush1.msra.mxu0 0.0
    %670 = vmatprep.subr.mxu0 0.0
    %671 = vmatpush1.msra.mxu0 0.0
    %672 = vmatprep.subr.mxu0 0.0
    %673 = vmatpush1.msra.mxu0 0.0
    %674 = vmatprep.subr.mxu0 0.0
    %675 = vmatpush1.msra.mxu0 0.0
    %676 = vmatprep.subr.mxu0 0.0
    %677 = vmatpush1.msra.mxu0 0.0
    %678 = vmatprep.subr.mxu0 0.0
    %679 = vmatpush1.msra.mxu0 0.0
    %680 = vmatprep.subr.mxu0 0.0
    %681 = vmatpush1.msra.mxu0 0.0
    %682 = vmatprep.subr.mxu0 0.0
    %683 = vmatpush1.msra.mxu0 0.0
    %684 = vmatprep.subr.mxu0 0.0
    %685 = vmatpush1.msra.mxu0 0.0
    %686 = vmatprep.subr.mxu0 0.0
    %687 = vmatpush1.msra.mxu0 0.0
    %688 = vmatprep.subr.mxu0 0.0
    %689 = vmatpush1.msra.mxu0 0.0
    %690 = vmatprep.subr.mxu0 0.0
    %691 = vmatpush1.msra.mxu0 0.0
    %692 = vmatprep.subr.mxu0 0.0
    %693 = vmatpush1.msra.mxu0 0.0
    %694 = vmatprep.subr.mxu0 0.0
    %695 = vmatpush1.msra.mxu0 0.0
    %696 = vmatprep.subr.mxu0 0.0
    %697 = vmatpush1.msra.mxu0 0.0
    %698 = vmatprep.subr.mxu0 0.0
    %699 = vmatpush1.msra.mxu0 0.0
    %700 = vmatprep.subr.mxu0 0.0
    %701 = vmatpush1.msra.mxu0 0.0
    %702 = vmatprep.subr.mxu0 0.0
    %703 = vmatpush1.msra.mxu0 0.0
    %704 = vmatprep.subr.mxu0 0.0
    %705 = vmatpush1.msra.mxu0 0.0
    %706 = vmatprep.subr.mxu0 0.0
    %707 = vmatpush1.msra.mxu0 0.0
    %708 = vmatprep.subr.mxu0 0.0
    %709 = vmatpush1.msra.mxu0 0.0
    %710 = vmatprep.subr.mxu0 0.0
    %711 = vmatpush1.msra.mxu0 0.0
    %712 = vmatprep.subr.mxu0 0.0
    %713 = vmatpush1.msra.mxu0 0.0
    %714 = vmatprep.mubr.f32.mxu0 0.0
    %715 = vmatmul.mubr.f32.gmra.mrb[0].mxu0 %v577
    %v716 = vpop.f32.mrb[0].mxu0
    %v717 = vadd.f32 %v73, %v716
    %v718 = vpop.f32.mrb[0].mxu0
    %719 = vdwg.mxu0
    %v720 = vxor.u32 %v646, 2147483648
    %v721 = vmul.f32 %v720, 1.442695
    %v722 = vpow.pop %v721
    %v723 = vadd.f32 %v722, 1.0
    %v724 = vrcp.pop %v723
    %v725 = vmul.f32 1.0, %v724
    %v726 = vxor.u32 %v648, 2147483648
    %v727 = vmul.f32 %v726, 1.442695
    %v728 = vpow.pop %v727
    %v729 = vadd.f32 %v728, 1.0
    %v730 = vrcp.pop %v729
    %v731 = vmul.f32 1.0, %v730
    %v732 = vmul.f32 %v725, %v717
    %v733 = vadd.f32 %v59, %v732
    %v734 = vtanh.pop %v733
    %v735 = vsub.f32 %v570, %v734
    %v736 = vmul.f32 %v731, %v735
    %v737 = vadd.f32 %v734, %v736
    %739 = vrot.lane.b32.xlu0 %v737, 24
    %v740 = vpop.permute.xlu0 %739
    %vm742 = vcmask 255168
    %743 = vst.msk [vmem:[#allocation2] sm:$0x3] %vm742, %v740
    %v744 = vsel %vm77, %v737, 0
    %746 = vmatprep.subr.mxu0 %v55
    %747 = vmatpush1.msra.mxu0 %v54
    %748 = vmatprep.subr.mxu0 0.0
    %749 = vmatpush1.msra.mxu0 0.0
    %750 = vmatprep.subr.mxu0 0.0
    %751 = vmatpush1.msra.mxu0 0.0
    %752 = vmatprep.subr.mxu0 0.0
    %753 = vmatpush1.msra.mxu0 0.0
    %754 = vmatprep.subr.mxu0 0.0
    %755 = vmatpush1.msra.mxu0 0.0
    %756 = vmatprep.subr.mxu0 0.0
    %757 = vmatpush1.msra.mxu0 0.0
    %758 = vmatprep.subr.mxu0 0.0
    %759 = vmatpush1.msra.mxu0 0.0
    %760 = vmatprep.subr.mxu0 0.0
    %761 = vmatpush1.msra.mxu0 0.0
    %762 = vmatprep.subr.mxu0 0.0
    %763 = vmatpush1.msra.mxu0 0.0
    %764 = vmatprep.subr.mxu0 0.0
    %765 = vmatpush1.msra.mxu0 0.0
    %766 = vmatprep.subr.mxu0 0.0
    %767 = vmatpush1.msra.mxu0 0.0
    %768 = vmatprep.subr.mxu0 0.0
    %769 = vmatpush1.msra.mxu0 0.0
    %770 = vmatprep.subr.mxu0 0.0
    %771 = vmatpush1.msra.mxu0 0.0
    %772 = vmatprep.subr.mxu0 0.0
    %773 = vmatpush1.msra.mxu0 0.0
    %774 = vmatprep.subr.mxu0 0.0
    %775 = vmatpush1.msra.mxu0 0.0
    %776 = vmatprep.subr.mxu0 0.0
    %777 = vmatpush1.msra.mxu0 0.0
    %778 = vmatprep.subr.mxu0 0.0
    %779 = vmatpush1.msra.mxu0 0.0
    %780 = vmatprep.subr.mxu0 0.0
    %781 = vmatpush1.msra.mxu0 0.0
    %782 = vmatprep.subr.mxu0 0.0
    %783 = vmatpush1.msra.mxu0 0.0
    %784 = vmatprep.subr.mxu0 0.0
    %785 = vmatpush1.msra.mxu0 0.0
    %786 = vmatprep.subr.mxu0 0.0
    %787 = vmatpush1.msra.mxu0 0.0
    %788 = vmatprep.subr.mxu0 0.0
    %789 = vmatpush1.msra.mxu0 0.0
    %790 = vmatprep.subr.mxu0 0.0
    %791 = vmatpush1.msra.mxu0 0.0
    %792 = vmatprep.subr.mxu0 0.0
    %793 = vmatpush1.msra.mxu0 0.0
    %794 = vmatprep.subr.mxu0 0.0
    %795 = vmatpush1.msra.mxu0 0.0
    %796 = vmatprep.subr.mxu0 0.0
    %797 = vmatpush1.msra.mxu0 0.0
    %798 = vmatprep.subr.mxu0 0.0
    %799 = vmatpush1.msra.mxu0 0.0
    %800 = vmatprep.subr.mxu0 0.0
    %801 = vmatpush1.msra.mxu0 0.0
    %802 = vmatprep.subr.mxu0 0.0
    %803 = vmatpush1.msra.mxu0 0.0
    %804 = vmatprep.subr.mxu0 0.0
    %805 = vmatpush1.msra.mxu0 0.0
    %806 = vmatprep.subr.mxu0 0.0
    %807 = vmatpush1.msra.mxu0 0.0
    %808 = vmatprep.subr.mxu0 0.0
    %809 = vmatpush1.msra.mxu0 0.0
    %810 = vmatprep.mubr.f32.mxu0 0.0
    %811 = vmatmul.mubr.f32.gmra.mrb[0].mxu0 %v744
    %v812 = vpop.f32.mrb[0].mxu0
    %v813 = vadd.f32 %v65, %v812
    %v814 = vpop.f32.mrb[0].mxu0
    %v815 = vadd.f32 %v69, %v814
    %816 = vdwg.mxu0
    %817 = vmatprep.subr.mxu0 0.0
    %818 = vmatpush1.msra.mxu0 %v56
    %819 = vmatprep.subr.mxu0 0.0
    %820 = vmatpush1.msra.mxu0 0.0
    %821 = vmatprep.subr.mxu0 0.0
    %822 = vmatpush1.msra.mxu0 0.0
    %823 = vmatprep.subr.mxu0 0.0
    %824 = vmatpush1.msra.mxu0 0.0
    %825 = vmatprep.subr.mxu0 0.0
    %826 = vmatpush1.msra.mxu0 0.0
    %827 = vmatprep.subr.mxu0 0.0
    %828 = vmatpush1.msra.mxu0 0.0
    %829 = vmatprep.subr.mxu0 0.0
    %830 = vmatpush1.msra.mxu0 0.0
    %831 = vmatprep.subr.mxu0 0.0
    %832 = vmatpush1.msra.mxu0 0.0
    %833 = vmatprep.subr.mxu0 0.0
    %834 = vmatpush1.msra.mxu0 0.0
    %835 = vmatprep.subr.mxu0 0.0
    %836 = vmatpush1.msra.mxu0 0.0
    %837 = vmatprep.subr.mxu0 0.0
    %838 = vmatpush1.msra.mxu0 0.0
    %839 = vmatprep.subr.mxu0 0.0
    %840 = vmatpush1.msra.mxu0 0.0
    %841 = vmatprep.subr.mxu0 0.0
    %842 = vmatpush1.msra.mxu0 0.0
    %843 = vmatprep.subr.mxu0 0.0
    %844 = vmatpush1.msra.mxu0 0.0
    %845 = vmatprep.subr.mxu0 0.0
    %846 = vmatpush1.msra.mxu0 0.0
    %847 = vmatprep.subr.mxu0 0.0
    %848 = vmatpush1.msra.mxu0 0.0
    %849 = vmatprep.subr.mxu0 0.0
    %850 = vmatpush1.msra.mxu0 0.0
    %851 = vmatprep.subr.mxu0 0.0
    %852 = vmatpush1.msra.mxu0 0.0
    %853 = vmatprep.subr.mxu0 0.0
    %854 = vmatpush1.msra.mxu0 0.0
    %855 = vmatprep.subr.mxu0 0.0
    %856 = vmatpush1.msra.mxu0 0.0
    %857 = vmatprep.subr.mxu0 0.0
    %858 = vmatpush1.msra.mxu0 0.0
    %859 = vmatprep.subr.mxu0 0.0
    %860 = vmatpush1.msra.mxu0 0.0
    %861 = vmatprep.subr.mxu0 0.0
    %862 = vmatpush1.msra.mxu0 0.0
    %863 = vmatprep.subr.mxu0 0.0
    %864 = vmatpush1.msra.mxu0 0.0
    %865 = vmatprep.subr.mxu0 0.0
    %866 = vmatpush1.msra.mxu0 0.0
    %867 = vmatprep.subr.mxu0 0.0
    %868 = vmatpush1.msra.mxu0 0.0
    %869 = vmatprep.subr.mxu0 0.0
    %870 = vmatpush1.msra.mxu0 0.0
    %871 = vmatprep.subr.mxu0 0.0
    %872 = vmatpush1.msra.mxu0 0.0
    %873 = vmatprep.subr.mxu0 0.0
    %874 = vmatpush1.msra.mxu0 0.0
    %875 = vmatprep.subr.mxu0 0.0
    %876 = vmatpush1.msra.mxu0 0.0
    %877 = vmatprep.subr.mxu0 0.0
    %878 = vmatpush1.msra.mxu0 0.0
    %879 = vmatprep.subr.mxu0 0.0
    %880 = vmatpush1.msra.mxu0 0.0
    %881 = vmatprep.mubr.f32.mxu0 0.0
    %882 = vmatmul.mubr.f32.gmra.mrb[0].mxu0 %v744
    %v883 = vpop.f32.mrb[0].mxu0
    %v884 = vadd.f32 %v73, %v883
    %v885 = vpop.f32.mrb[0].mxu0
    %886 = vdwg.mxu0
    %v887 = vxor.u32 %v813, 2147483648
    %v888 = vmul.f32 %v887, 1.442695
    %v889 = vpow.pop %v888
    %v890 = vadd.f32 %v889, 1.0
    %v891 = vrcp.pop %v890
    %v892 = vmul.f32 1.0, %v891
    %v893 = vxor.u32 %v815, 2147483648
    %v894 = vmul.f32 %v893, 1.442695
    %v895 = vpow.pop %v894
    %v896 = vadd.f32 %v895, 1.0
    %v897 = vrcp.pop %v896
    %v898 = vmul.f32 1.0, %v897
    %v899 = vmul.f32 %v892, %v884
    %v900 = vadd.f32 %v59, %v899
    %v901 = vtanh.pop %v900
    %v902 = vsub.f32 %v737, %v901
    %v903 = vmul.f32 %v898, %v902
    %v904 = vadd.f32 %v901, %v903
    %906 = vrot.lane.b32.xlu0 %v904, 32
    %v907 = vpop.permute.xlu0 %906
    %vm909 = vcmask 320768
    %910 = vst.msk [vmem:[#allocation2] sm:$0x3] %vm909, %v907
    %v911 = vsel %vm77, %v904, 0
    %913 = vmatprep.subr.mxu0 %v55
    %914 = vmatpush1.msra.mxu0 %v54
    %915 = vmatprep.subr.mxu0 0.0
    %916 = vmatpush1.msra.mxu0 0.0
    %917 = vmatprep.subr.mxu0 0.0
    %918 = vmatpush1.msra.mxu0 0.0
    %919 = vmatprep.subr.mxu0 0.0
    %920 = vmatpush1.msra.mxu0 0.0
    %921 = vmatprep.subr.mxu0 0.0
    %922 = vmatpush1.msra.mxu0 0.0
    %923 = vmatprep.subr.mxu0 0.0
    %924 = vmatpush1.msra.mxu0 0.0
    %925 = vmatprep.subr.mxu0 0.0
    %926 = vmatpush1.msra.mxu0 0.0
    %927 = vmatprep.subr.mxu0 0.0
    %928 = vmatpush1.msra.mxu0 0.0
    %929 = vmatprep.subr.mxu0 0.0
    %930 = vmatpush1.msra.mxu0 0.0
    %931 = vmatprep.subr.mxu0 0.0
    %932 = vmatpush1.msra.mxu0 0.0
    %933 = vmatprep.subr.mxu0 0.0
    %934 = vmatpush1.msra.mxu0 0.0
    %935 = vmatprep.subr.mxu0 0.0
    %936 = vmatpush1.msra.mxu0 0.0
    %937 = vmatprep.subr.mxu0 0.0
    %938 = vmatpush1.msra.mxu0 0.0
    %939 = vmatprep.subr.mxu0 0.0
    %940 = vmatpush1.msra.mxu0 0.0
    %941 = vmatprep.subr.mxu0 0.0
    %942 = vmatpush1.msra.mxu0 0.0
    %943 = vmatprep.subr.mxu0 0.0
    %944 = vmatpush1.msra.mxu0 0.0
    %945 = vmatprep.subr.mxu0 0.0
    %946 = vmatpush1.msra.mxu0 0.0
    %947 = vmatprep.subr.mxu0 0.0
    %948 = vmatpush1.msra.mxu0 0.0
    %949 = vmatprep.subr.mxu0 0.0
    %950 = vmatpush1.msra.mxu0 0.0
    %951 = vmatprep.subr.mxu0 0.0
    %952 = vmatpush1.msra.mxu0 0.0
    %953 = vmatprep.subr.mxu0 0.0
    %954 = vmatpush1.msra.mxu0 0.0
    %955 = vmatprep.subr.mxu0 0.0
    %956 = vmatpush1.msra.mxu0 0.0
    %957 = vmatprep.subr.mxu0 0.0
    %958 = vmatpush1.msra.mxu0 0.0
    %959 = vmatprep.subr.mxu0 0.0
    %960 = vmatpush1.msra.mxu0 0.0
    %961 = vmatprep.subr.mxu0 0.0
    %962 = vmatpush1.msra.mxu0 0.0
    %963 = vmatprep.subr.mxu0 0.0
    %964 = vmatpush1.msra.mxu0 0.0
    %965 = vmatprep.subr.mxu0 0.0
    %966 = vmatpush1.msra.mxu0 0.0
    %967 = vmatprep.subr.mxu0 0.0
    %968 = vmatpush1.msra.mxu0 0.0
    %969 = vmatprep.subr.mxu0 0.0
    %970 = vmatpush1.msra.mxu0 0.0
    %971 = vmatprep.subr.mxu0 0.0
    %972 = vmatpush1.msra.mxu0 0.0
    %973 = vmatprep.subr.mxu0 0.0
    %974 = vmatpush1.msra.mxu0 0.0
    %975 = vmatprep.subr.mxu0 0.0
    %976 = vmatpush1.msra.mxu0 0.0
    %977 = vmatprep.mubr.f32.mxu0 0.0
    %978 = vmatmul.mubr.f32.gmra.mrb[0].mxu0 %v911
    %v979 = vpop.f32.mrb[0].mxu0
    %v980 = vadd.f32 %v65, %v979
    %v981 = vpop.f32.mrb[0].mxu0
    %v982 = vadd.f32 %v69, %v981
    %983 = vdwg.mxu0
    %984 = vmatprep.subr.mxu0 0.0
    %985 = vmatpush1.msra.mxu0 %v56
    %986 = vmatprep.subr.mxu0 0.0
    %987 = vmatpush1.msra.mxu0 0.0
    %988 = vmatprep.subr.mxu0 0.0
    %989 = vmatpush1.msra.mxu0 0.0
    %990 = vmatprep.subr.mxu0 0.0
    %991 = vmatpush1.msra.mxu0 0.0
    %992 = vmatprep.subr.mxu0 0.0
    %993 = vmatpush1.msra.mxu0 0.0
    %994 = vmatprep.subr.mxu0 0.0
    %995 = vmatpush1.msra.mxu0 0.0
    %996 = vmatprep.subr.mxu0 0.0
    %997 = vmatpush1.msra.mxu0 0.0
    %998 = vmatprep.subr.mxu0 0.0
    %999 = vmatpush1.msra.mxu0 0.0
    %1000 = vmatprep.subr.mxu0 0.0
    %1001 = vmatpush1.msra.mxu0 0.0
    %1002 = vmatprep.subr.mxu0 0.0
    %1003 = vmatpush1.msra.mxu0 0.0
    %1004 = vmatprep.subr.mxu0 0.0
    %1005 = vmatpush1.msra.mxu0 0.0
    %1006 = vmatprep.subr.mxu0 0.0
    %1007 = vmatpush1.msra.mxu0 0.0
    %1008 = vmatprep.subr.mxu0 0.0
    %1009 = vmatpush1.msra.mxu0 0.0
    %1010 = vmatprep.subr.mxu0 0.0
    %1011 = vmatpush1.msra.mxu0 0.0
    %1012 = vmatprep.subr.mxu0 0.0
    %1013 = vmatpush1.msra.mxu0 0.0
    %1014 = vmatprep.subr.mxu0 0.0
    %1015 = vmatpush1.msra.mxu0 0.0
    %1016 = vmatprep.subr.mxu0 0.0
    %1017 = vmatpush1.msra.mxu0 0.0
    %1018 = vmatprep.subr.mxu0 0.0
    %1019 = vmatpush1.msra.mxu0 0.0
    %1020 = vmatprep.subr.mxu0 0.0
    %1021 = vmatpush1.msra.mxu0 0.0
    %1022 = vmatprep.subr.mxu0 0.0
    %1023 = vmatpush1.msra.mxu0 0.0
    %1024 = vmatprep.subr.mxu0 0.0
    %1025 = vmatpush1.msra.mxu0 0.0
    %1026 = vmatprep.subr.mxu0 0.0
    %1027 = vmatpush1.msra.mxu0 0.0
    %1028 = vmatprep.subr.mxu0 0.0
    %1029 = vmatpush1.msra.mxu0 0.0
    %1030 = vmatprep.subr.mxu0 0.0
    %1031 = vmatpush1.msra.mxu0 0.0
    %1032 = vmatprep.subr.mxu0 0.0
    %1033 = vmatpush1.msra.mxu0 0.0
    %1034 = vmatprep.subr.mxu0 0.0
    %1035 = vmatpush1.msra.mxu0 0.0
    %1036 = vmatprep.subr.mxu0 0.0
    %1037 = vmatpush1.msra.mxu0 0.0
    %1038 = vmatprep.subr.mxu0 0.0
    %1039 = vmatpush1.msra.mxu0 0.0
    %1040 = vmatprep.subr.mxu0 0.0
    %1041 = vmatpush1.msra.mxu0 0.0
    %1042 = vmatprep.subr.mxu0 0.0
    %1043 = vmatpush1.msra.mxu0 0.0
    %1044 = vmatprep.subr.mxu0 0.0
    %1045 = vmatpush1.msra.mxu0 0.0
    %1046 = vmatprep.subr.mxu0 0.0
    %1047 = vmatpush1.msra.mxu0 0.0
    %1048 = vmatprep.mubr.f32.mxu0 0.0
    %1049 = vmatmul.mubr.f32.gmra.mrb[0].mxu0 %v911
    %v1050 = vpop.f32.mrb[0].mxu0
    %v1051 = vadd.f32 %v73, %v1050
    %v1052 = vpop.f32.mrb[0].mxu0
    %1053 = vdwg.mxu0
    %v1054 = vxor.u32 %v980, 2147483648
    %v1055 = vmul.f32 %v1054, 1.442695
    %v1056 = vpow.pop %v1055
    %v1057 = vadd.f32 %v1056, 1.0
    %v1058 = vrcp.pop %v1057
    %v1059 = vmul.f32 1.0, %v1058
    %v1060 = vxor.u32 %v982, 2147483648
    %v1061 = vmul.f32 %v1060, 1.442695
    %v1062 = vpow.pop %v1061
    %v1063 = vadd.f32 %v1062, 1.0
    %v1064 = vrcp.pop %v1063
    %v1065 = vmul.f32 1.0, %v1064
    %v1066 = vmul.f32 %v1059, %v1051
    %v1067 = vadd.f32 %v59, %v1066
    %v1068 = vtanh.pop %v1067
    %v1069 = vsub.f32 %v904, %v1068
    %v1070 = vmul.f32 %v1065, %v1069
    %v1071 = vadd.f32 %v1068, %v1070
    %1073 = vrot.lane.b32.xlu0 %v1071, 40
    %v1074 = vpop.permute.xlu0 %1073
    %vm1076 = vcmask 386368
    %1077 = vst.msk [vmem:[#allocation2] sm:$0x3] %vm1076, %v1074
    %v1078 = vsel %vm77, %v1071, 0
    %1080 = vmatprep.subr.mxu0 %v55
    %1081 = vmatpush1.msra.mxu0 %v54
    %1082 = vmatprep.subr.mxu0 0.0
    %1083 = vmatpush1.msra.mxu0 0.0
    %1084 = vmatprep.subr.mxu0 0.0
    %1085 = vmatpush1.msra.mxu0 0.0
    %1086 = vmatprep.subr.mxu0 0.0
    %1087 = vmatpush1.msra.mxu0 0.0
    %1088 = vmatprep.subr.mxu0 0.0
    %1089 = vmatpush1.msra.mxu0 0.0
    %1090 = vmatprep.subr.mxu0 0.0
    %1091 = vmatpush1.msra.mxu0 0.0
    %1092 = vmatprep.subr.mxu0 0.0
    %1093 = vmatpush1.msra.mxu0 0.0
    %1094 = vmatprep.subr.mxu0 0.0
    %1095 = vmatpush1.msra.mxu0 0.0
    %1096 = vmatprep.subr.mxu0 0.0
    %1097 = vmatpush1.msra.mxu0 0.0
    %1098 = vmatprep.subr.mxu0 0.0
    %1099 = vmatpush1.msra.mxu0 0.0
    %1100 = vmatprep.subr.mxu0 0.0
    %1101 = vmatpush1.msra.mxu0 0.0
    %1102 = vmatprep.subr.mxu0 0.0
    %1103 = vmatpush1.msra.mxu0 0.0
    %1104 = vmatprep.subr.mxu0 0.0
    %1105 = vmatpush1.msra.mxu0 0.0
    %1106 = vmatprep.subr.mxu0 0.0
    %1107 = vmatpush1.msra.mxu0 0.0
    %1108 = vmatprep.subr.mxu0 0.0
    %1109 = vmatpush1.msra.mxu0 0.0
    %1110 = vmatprep.subr.mxu0 0.0
    %1111 = vmatpush1.msra.mxu0 0.0
    %1112 = vmatprep.subr.mxu0 0.0
    %1113 = vmatpush1.msra.mxu0 0.0
    %1114 = vmatprep.subr.mxu0 0.0
    %1115 = vmatpush1.msra.mxu0 0.0
    %1116 = vmatprep.subr.mxu0 0.0
    %1117 = vmatpush1.msra.mxu0 0.0
    %1118 = vmatprep.subr.mxu0 0.0
    %1119 = vmatpush1.msra.mxu0 0.0
    %1120 = vmatprep.subr.mxu0 0.0
    %1121 = vmatpush1.msra.mxu0 0.0
    %1122 = vmatprep.subr.mxu0 0.0
    %1123 = vmatpush1.msra.mxu0 0.0
    %1124 = vmatprep.subr.mxu0 0.0
    %1125 = vmatpush1.msra.mxu0 0.0
    %1126 = vmatprep.subr.mxu0 0.0
    %1127 = vmatpush1.msra.mxu0 0.0
    %1128 = vmatprep.subr.mxu0 0.0
    %1129 = vmatpush1.msra.mxu0 0.0
    %1130 = vmatprep.subr.mxu0 0.0
    %1131 = vmatpush1.msra.mxu0 0.0
    %1132 = vmatprep.subr.mxu0 0.0
    %1133 = vmatpush1.msra.mxu0 0.0
    %1134 = vmatprep.subr.mxu0 0.0
    %1135 = vmatpush1.msra.mxu0 0.0
    %1136 = vmatprep.subr.mxu0 0.0
    %1137 = vmatpush1.msra.mxu0 0.0
    %1138 = vmatprep.subr.mxu0 0.0
    %1139 = vmatpush1.msra.mxu0 0.0
    %1140 = vmatprep.subr.mxu0 0.0
    %1141 = vmatpush1.msra.mxu0 0.0
    %1142 = vmatprep.subr.mxu0 0.0
    %1143 = vmatpush1.msra.mxu0 0.0
    %1144 = vmatprep.mubr.f32.mxu0 0.0
    %1145 = vmatmul.mubr.f32.gmra.mrb[0].mxu0 %v1078
    %v1146 = vpop.f32.mrb[0].mxu0
    %v1147 = vadd.f32 %v65, %v1146
    %v1148 = vpop.f32.mrb[0].mxu0
    %v1149 = vadd.f32 %v69, %v1148
    %1150 = vdwg.mxu0
    %1151 = vmatprep.subr.mxu0 0.0
    %1152 = vmatpush1.msra.mxu0 %v56
    %1153 = vmatprep.subr.mxu0 0.0
    %1154 = vmatpush1.msra.mxu0 0.0
    %1155 = vmatprep.subr.mxu0 0.0
    %1156 = vmatpush1.msra.mxu0 0.0
    %1157 = vmatprep.subr.mxu0 0.0
    %1158 = vmatpush1.msra.mxu0 0.0
    %1159 = vmatprep.subr.mxu0 0.0
    %1160 = vmatpush1.msra.mxu0 0.0
    %1161 = vmatprep.subr.mxu0 0.0
    %1162 = vmatpush1.msra.mxu0 0.0
    %1163 = vmatprep.subr.mxu0 0.0
    %1164 = vmatpush1.msra.mxu0 0.0
    %1165 = vmatprep.subr.mxu0 0.0
    %1166 = vmatpush1.msra.mxu0 0.0
    %1167 = vmatprep.subr.mxu0 0.0
    %1168 = vmatpush1.msra.mxu0 0.0
    %1169 = vmatprep.subr.mxu0 0.0
    %1170 = vmatpush1.msra.mxu0 0.0
    %1171 = vmatprep.subr.mxu0 0.0
    %1172 = vmatpush1.msra.mxu0 0.0
    %1173 = vmatprep.subr.mxu0 0.0
    %1174 = vmatpush1.msra.mxu0 0.0
    %1175 = vmatprep.subr.mxu0 0.0
    %1176 = vmatpush1.msra.mxu0 0.0
    %1177 = vmatprep.subr.mxu0 0.0
    %1178 = vmatpush1.msra.mxu0 0.0
    %1179 = vmatprep.subr.mxu0 0.0
    %1180 = vmatpush1.msra.mxu0 0.0
    %1181 = vmatprep.subr.mxu0 0.0
    %1182 = vmatpush1.msra.mxu0 0.0
    %1183 = vmatprep.subr.mxu0 0.0
    %1184 = vmatpush1.msra.mxu0 0.0
    %1185 = vmatprep.subr.mxu0 0.0
    %1186 = vmatpush1.msra.mxu0 0.0
    %1187 = vmatprep.subr.mxu0 0.0
    %1188 = vmatpush1.msra.mxu0 0.0
    %1189 = vmatprep.subr.mxu0 0.0
    %1190 = vmatpush1.msra.mxu0 0.0
    %1191 = vmatprep.subr.mxu0 0.0
    %1192 = vmatpush1.msra.mxu0 0.0
    %1193 = vmatprep.subr.mxu0 0.0
    %1194 = vmatpush1.msra.mxu0 0.0
    %1195 = vmatprep.subr.mxu0 0.0
    %1196 = vmatpush1.msra.mxu0 0.0
    %1197 = vmatprep.subr.mxu0 0.0
    %1198 = vmatpush1.msra.mxu0 0.0
    %1199 = vmatprep.subr.mxu0 0.0
    %1200 = vmatpush1.msra.mxu0 0.0
    %1201 = vmatprep.subr.mxu0 0.0
    %1202 = vmatpush1.msra.mxu0 0.0
    %1203 = vmatprep.subr.mxu0 0.0
    %1204 = vmatpush1.msra.mxu0 0.0
    %1205 = vmatprep.subr.mxu0 0.0
    %1206 = vmatpush1.msra.mxu0 0.0
    %1207 = vmatprep.subr.mxu0 0.0
    %1208 = vmatpush1.msra.mxu0 0.0
    %1209 = vmatprep.subr.mxu0 0.0
    %1210 = vmatpush1.msra.mxu0 0.0
    %1211 = vmatprep.subr.mxu0 0.0
    %1212 = vmatpush1.msra.mxu0 0.0
    %1213 = vmatprep.subr.mxu0 0.0
    %1214 = vmatpush1.msra.mxu0 0.0
    %1215 = vmatprep.mubr.f32.mxu0 0.0
    %1216 = vmatmul.mubr.f32.gmra.mrb[0].mxu0 %v1078
    %v1217 = vpop.f32.mrb[0].mxu0
    %v1218 = vadd.f32 %v73, %v1217
    %v1219 = vpop.f32.mrb[0].mxu0
    %1220 = vdwg.mxu0
    %v1221 = vxor.u32 %v1147, 2147483648
    %v1222 = vmul.f32 %v1221, 1.442695
    %v1223 = vpow.pop %v1222
    %v1224 = vadd.f32 %v1223, 1.0
    %v1225 = vrcp.pop %v1224
    %v1226 = vmul.f32 1.0, %v1225
    %v1227 = vxor.u32 %v1149, 2147483648
    %v1228 = vmul.f32 %v1227, 1.442695
    %v1229 = vpow.pop %v1228
    %v1230 = vadd.f32 %v1229, 1.0
    %v1231 = vrcp.pop %v1230
    %v1232 = vmul.f32 1.0, %v1231
    %v1233 = vmul.f32 %v1226, %v1218
    %v1234 = vadd.f32 %v59, %v1233
    %v1235 = vtanh.pop %v1234
    %v1236 = vsub.f32 %v1071, %v1235
    %v1237 = vmul.f32 %v1232, %v1236
    %v1238 = vadd.f32 %v1235, %v1237
    %1240 = vrot.lane.b32.xlu0 %v1238, 48
    %v1241 = vpop.permute.xlu0 %1240
    %vm1243 = vcmask 451968
    %1244 = vst.msk [vmem:[#allocation2] sm:$0x3] %vm1243, %v1241
    %v1245 = vsel %vm77, %v1238, 0
    %1247 = vmatprep.subr.mxu0 %v55
    %1248 = vmatpush1.msra.mxu0 %v54
    %1249 = vmatprep.subr.mxu0 0.0
    %1250 = vmatpush1.msra.mxu0 0.0
    %1251 = vmatprep.subr.mxu0 0.0
    %1252 = vmatpush1.msra.mxu0 0.0
    %1253 = vmatprep.subr.mxu0 0.0
    %1254 = vmatpush1.msra.mxu0 0.0
    %1255 = vmatprep.subr.mxu0 0.0
    %1256 = vmatpush1.msra.mxu0 0.0
    %1257 = vmatprep.subr.mxu0 0.0
    %1258 = vmatpush1.msra.mxu0 0.0
    %1259 = vmatprep.subr.mxu0 0.0
    %1260 = vmatpush1.msra.mxu0 0.0
    %1261 = vmatprep.subr.mxu0 0.0
    %1262 = vmatpush1.msra.mxu0 0.0
    %1263 = vmatprep.subr.mxu0 0.0
    %1264 = vmatpush1.msra.mxu0 0.0
    %1265 = vmatprep.subr.mxu0 0.0
    %1266 = vmatpush1.msra.mxu0 0.0
    %1267 = vmatprep.subr.mxu0 0.0
    %1268 = vmatpush1.msra.mxu0 0.0
    %1269 = vmatprep.subr.mxu0 0.0
    %1270 = vmatpush1.msra.mxu0 0.0
    %1271 = vmatprep.subr.mxu0 0.0
    %1272 = vmatpush1.msra.mxu0 0.0
    %1273 = vmatprep.subr.mxu0 0.0
    %1274 = vmatpush1.msra.mxu0 0.0
    %1275 = vmatprep.subr.mxu0 0.0
    %1276 = vmatpush1.msra.mxu0 0.0
    %1277 = vmatprep.subr.mxu0 0.0
    %1278 = vmatpush1.msra.mxu0 0.0
    %1279 = vmatprep.subr.mxu0 0.0
    %1280 = vmatpush1.msra.mxu0 0.0
    %1281 = vmatprep.subr.mxu0 0.0
    %1282 = vmatpush1.msra.mxu0 0.0
    %1283 = vmatprep.subr.mxu0 0.0
    %1284 = vmatpush1.msra.mxu0 0.0
    %1285 = vmatprep.subr.mxu0 0.0
    %1286 = vmatpush1.msra.mxu0 0.0
    %1287 = vmatprep.subr.mxu0 0.0
    %1288 = vmatpush1.msra.mxu0 0.0
    %1289 = vmatprep.subr.mxu0 0.0
    %1290 = vmatpush1.msra.mxu0 0.0
    %1291 = vmatprep.subr.mxu0 0.0
    %1292 = vmatpush1.msra.mxu0 0.0
    %1293 = vmatprep.subr.mxu0 0.0
    %1294 = vmatpush1.msra.mxu0 0.0
    %1295 = vmatprep.subr.mxu0 0.0
    %1296 = vmatpush1.msra.mxu0 0.0
    %1297 = vmatprep.subr.mxu0 0.0
    %1298 = vmatpush1.msra.mxu0 0.0
    %1299 = vmatprep.subr.mxu0 0.0
    %1300 = vmatpush1.msra.mxu0 0.0
    %1301 = vmatprep.subr.mxu0 0.0
    %1302 = vmatpush1.msra.mxu0 0.0
    %1303 = vmatprep.subr.mxu0 0.0
    %1304 = vmatpush1.msra.mxu0 0.0
    %1305 = vmatprep.subr.mxu0 0.0
    %1306 = vmatpush1.msra.mxu0 0.0
    %1307 = vmatprep.subr.mxu0 0.0
    %1308 = vmatpush1.msra.mxu0 0.0
    %1309 = vmatprep.subr.mxu0 0.0
    %1310 = vmatpush1.msra.mxu0 0.0
    %1311 = vmatprep.mubr.f32.mxu0 0.0
    %1312 = vmatmul.mubr.f32.gmra.mrb[0].mxu0 %v1245
    %v1313 = vpop.f32.mrb[0].mxu0
    %v1314 = vadd.f32 %v65, %v1313
    %v1315 = vpop.f32.mrb[0].mxu0
    %v1316 = vadd.f32 %v69, %v1315
    %1317 = vdwg.mxu0
    %1318 = vmatprep.subr.mxu0 0.0
    %1319 = vmatpush1.msra.mxu0 %v56
    %1320 = vmatprep.subr.mxu0 0.0
    %1321 = vmatpush1.msra.mxu0 0.0
    %1322 = vmatprep.subr.mxu0 0.0
    %1323 = vmatpush1.msra.mxu0 0.0
    %1324 = vmatprep.subr.mxu0 0.0
    %1325 = vmatpush1.msra.mxu0 0.0
    %1326 = vmatprep.subr.mxu0 0.0
    %1327 = vmatpush1.msra.mxu0 0.0
    %1328 = vmatprep.subr.mxu0 0.0
    %1329 = vmatpush1.msra.mxu0 0.0
    %1330 = vmatprep.subr.mxu0 0.0
    %1331 = vmatpush1.msra.mxu0 0.0
    %1332 = vmatprep.subr.mxu0 0.0
    %1333 = vmatpush1.msra.mxu0 0.0
    %1334 = vmatprep.subr.mxu0 0.0
    %1335 = vmatpush1.msra.mxu0 0.0
    %1336 = vmatprep.subr.mxu0 0.0
    %1337 = vmatpush1.msra.mxu0 0.0
    %1338 = vmatprep.subr.mxu0 0.0
    %1339 = vmatpush1.msra.mxu0 0.0
    %1340 = vmatprep.subr.mxu0 0.0
    %1341 = vmatpush1.msra.mxu0 0.0
    %1342 = vmatprep.subr.mxu0 0.0
    %1343 = vmatpush1.msra.mxu0 0.0
    %1344 = vmatprep.subr.mxu0 0.0
    %1345 = vmatpush1.msra.mxu0 0.0
    %1346 = vmatprep.subr.mxu0 0.0
    %1347 = vmatpush1.msra.mxu0 0.0
    %1348 = vmatprep.subr.mxu0 0.0
    %1349 = vmatpush1.msra.mxu0 0.0
    %1350 = vmatprep.subr.mxu0 0.0
    %1351 = vmatpush1.msra.mxu0 0.0
    %1352 = vmatprep.subr.mxu0 0.0
    %1353 = vmatpush1.msra.mxu0 0.0
    %1354 = vmatprep.subr.mxu0 0.0
    %1355 = vmatpush1.msra.mxu0 0.0
    %1356 = vmatprep.subr.mxu0 0.0
    %1357 = vmatpush1.msra.mxu0 0.0
    %1358 = vmatprep.subr.mxu0 0.0
    %1359 = vmatpush1.msra.mxu0 0.0
    %1360 = vmatprep.subr.mxu0 0.0
    %1361 = vmatpush1.msra.mxu0 0.0
    %1362 = vmatprep.subr.mxu0 0.0
    %1363 = vmatpush1.msra.mxu0 0.0
    %1364 = vmatprep.subr.mxu0 0.0
    %1365 = vmatpush1.msra.mxu0 0.0
    %1366 = vmatprep.subr.mxu0 0.0
    %1367 = vmatpush1.msra.mxu0 0.0
    %1368 = vmatprep.subr.mxu0 0.0
    %1369 = vmatpush1.msra.mxu0 0.0
    %1370 = vmatprep.subr.mxu0 0.0
    %1371 = vmatpush1.msra.mxu0 0.0
    %1372 = vmatprep.subr.mxu0 0.0
    %1373 = vmatpush1.msra.mxu0 0.0
    %1374 = vmatprep.subr.mxu0 0.0
    %1375 = vmatpush1.msra.mxu0 0.0
    %1376 = vmatprep.subr.mxu0 0.0
    %1377 = vmatpush1.msra.mxu0 0.0
    %1378 = vmatprep.subr.mxu0 0.0
    %1379 = vmatpush1.msra.mxu0 0.0
    %1380 = vmatprep.subr.mxu0 0.0
    %1381 = vmatpush1.msra.mxu0 0.0
    %1382 = vmatprep.mubr.f32.mxu0 0.0
    %1383 = vmatmul.mubr.f32.gmra.mrb[0].mxu0 %v1245
    %v1384 = vpop.f32.mrb[0].mxu0
    %v1385 = vadd.f32 %v73, %v1384
    %v1386 = vpop.f32.mrb[0].mxu0
    %1387 = vdwg.mxu0
    %v1388 = vxor.u32 %v1314, 2147483648
    %v1389 = vmul.f32 %v1388, 1.442695
    %v1390 = vpow.pop %v1389
    %v1391 = vadd.f32 %v1390, 1.0
    %v1392 = vrcp.pop %v1391
    %v1393 = vmul.f32 1.0, %v1392
    %v1394 = vxor.u32 %v1316, 2147483648
    %v1395 = vmul.f32 %v1394, 1.442695
    %v1396 = vpow.pop %v1395
    %v1397 = vadd.f32 %v1396, 1.0
    %v1398 = vrcp.pop %v1397
    %v1399 = vmul.f32 1.0, %v1398
    %v1400 = vmul.f32 %v1393, %v1385
    %v1401 = vadd.f32 %v59, %v1400
    %v1402 = vtanh.pop %v1401
    %v1403 = vsub.f32 %v1238, %v1402
    %v1404 = vmul.f32 %v1399, %v1403
    %v1405 = vadd.f32 %v1402, %v1404
    %1407 = vrot.lane.b32.xlu0 %v1405, 56
    %v1408 = vpop.permute.xlu0 %1407
    %vm1410 = vcmask 517568
    %1411 = vst.msk [vmem:[#allocation2] sm:$0x3] %vm1410, %v1408
    %v1412 = vld [vmem:[#allocation2] sm:$0x3]
    %v1413 = vld [vmem:[#allocation8] sm:$0xff]
    %v1414 = vld [vmem:[#allocation8 + $0x8] sm:$0xff]
    %v1415 = vld [vmem:[#allocation8 + $0x10] sm:$0xff]
    %v1416 = vld [vmem:[#allocation8 + $0x18] sm:$0xff]
    %v1417 = vld [vmem:[#allocation8 + $0x20] sm:$0xff]
    %v1418 = vld [vmem:[#allocation8 + $0x28] sm:$0xff]
    %v1419 = vld [vmem:[#allocation8 + $0x30] sm:$0xff]
    %v1420 = vld [vmem:[#allocation8 + $0x38] sm:$0xff]
    %v1421 = vld [vmem:[#allocation8 + $0x40] sm:$0xff]
    %v1422 = vld [vmem:[#allocation8 + $0x48] sm:$0xff]
    %v1423 = vld [vmem:[#allocation8 + $0x50] sm:$0xff]
    %v1424 = vld [vmem:[#allocation8 + $0x58] sm:$0xff]
    %v1425 = vld [vmem:[#allocation8 + $0x60] sm:$0xff]
    %v1426 = vld [vmem:[#allocation8 + $0x68] sm:$0xff]
    %v1427 = vld [vmem:[#allocation8 + $0x70] sm:$0xff]
    %v1428 = vld [vmem:[#allocation8 + $0x78] sm:$0xff]
    %v1429 = vld [vmem:[#allocation8 + $0x80] sm:$0xff]
    %v1430 = vld [vmem:[#allocation8 + $0x88] sm:$0xff]
    %v1431 = vld [vmem:[#allocation8 + $0x90] sm:$0xff]
    %v1432 = vld [vmem:[#allocation8 + $0x98] sm:$0xff]
    %v1433 = vld [vmem:[#allocation8 + $0xa0] sm:$0xff]
    %v1434 = vld [vmem:[#allocation8 + $0xa8] sm:$0xff]
    %v1435 = vld [vmem:[#allocation8 + $0xb0] sm:$0xff]
    %v1436 = vld [vmem:[#allocation8 + $0xb8] sm:$0xff]
    %v1437 = vld [vmem:[#allocation8 + $0xc0] sm:$0xff]
    %v1438 = vld [vmem:[#allocation8 + $0xc8] sm:$0xff]
    %v1439 = vld [vmem:[#allocation8 + $0xd0] sm:$0xff]
    %v1440 = vld [vmem:[#allocation8 + $0xd8] sm:$0xff]
    %v1441 = vld [vmem:[#allocation8 + $0xe0] sm:$0xff]
    %v1442 = vld [vmem:[#allocation8 + $0xe8] sm:$0xff]
    %v1443 = vld [vmem:[#allocation8 + $0xf0] sm:$0xff]
    %v1444 = vld [vmem:[#allocation8 + $0xf8] sm:$0xff]
    %s1445 = scalar_lea.vmem [#allocation8], 256
    %v1446 = vld [vmem:[%s1445] ss:$8 sm:$0xf]
    %v1448 = vlaneseq
    %v1449 = vshrl.u32 %v1448, 7
    %v1450 = vsub.s32 0, %v1449
    %v1451 = vrot.slane %v1446, %v1450
    %v1452 = vlaneseq
    %v1453 = vshrl.u32 %v1452, 7
    %v1454 = vsub.s32 1, %v1453
    %v1455 = vrot.slane %v1446, %v1454
    %v1456 = vlaneseq
    %v1457 = vshrl.u32 %v1456, 7
    %v1458 = vsub.s32 2, %v1457
    %v1459 = vrot.slane %v1446, %v1458
    %v1460 = vlaneseq
    %v1461 = vshrl.u32 %v1460, 7
    %v1462 = vsub.s32 3, %v1461
    %v1463 = vrot.slane %v1446, %v1462
    %vm1468 = vcmask 523264
    %v1470 = vsel %vm1468, %v1412, 0
    %1472 = vmatprep.subr.mxu0 %v1414
    %1473 = vmatpush1.msra.mxu0 %v1413
    %1474 = vmatprep.subr.mxu0 %v1418
    %1475 = vmatpush1.msra.mxu0 %v1417
    %1476 = vmatprep.subr.mxu0 %v1422
    %1477 = vmatpush1.msra.mxu0 %v1421
    %1478 = vmatprep.subr.mxu0 %v1426
    %1479 = vmatpush1.msra.mxu0 %v1425
    %1480 = vmatprep.subr.mxu0 %v1430
    %1481 = vmatpush1.msra.mxu0 %v1429
    %1482 = vmatprep.subr.mxu0 %v1434
    %1483 = vmatpush1.msra.mxu0 %v1433
    %1484 = vmatprep.subr.mxu0 %v1438
    %1485 = vmatpush1.msra.mxu0 %v1437
    %1486 = vmatprep.subr.mxu0 %v1442
    %1487 = vmatpush1.msra.mxu0 %v1441
    %1488 = vmatprep.subr.mxu0 0.0
    %1489 = vmatpush1.msra.mxu0 0.0
    %1490 = vmatprep.subr.mxu0 0.0
    %1491 = vmatpush1.msra.mxu0 0.0
    %1492 = vmatprep.subr.mxu0 0.0
    %1493 = vmatpush1.msra.mxu0 0.0
    %1494 = vmatprep.subr.mxu0 0.0
    %1495 = vmatpush1.msra.mxu0 0.0
    %1496 = vmatprep.subr.mxu0 0.0
    %1497 = vmatpush1.msra.mxu0 0.0
    %1498 = vmatprep.subr.mxu0 0.0
    %1499 = vmatpush1.msra.mxu0 0.0
    %1500 = vmatprep.subr.mxu0 0.0
    %1501 = vmatpush1.msra.mxu0 0.0
    %1502 = vmatprep.subr.mxu0 0.0
    %1503 = vmatpush1.msra.mxu0 0.0
    %1504 = vmatprep.subr.mxu0 0.0
    %1505 = vmatpush1.msra.mxu0 0.0
    %1506 = vmatprep.subr.mxu0 0.0
    %1507 = vmatpush1.msra.mxu0 0.0
    %1508 = vmatprep.subr.mxu0 0.0
    %1509 = vmatpush1.msra.mxu0 0.0
    %1510 = vmatprep.subr.mxu0 0.0
    %1511 = vmatpush1.msra.mxu0 0.0
    %1512 = vmatprep.subr.mxu0 0.0
    %1513 = vmatpush1.msra.mxu0 0.0
    %1514 = vmatprep.subr.mxu0 0.0
    %1515 = vmatpush1.msra.mxu0 0.0
    %1516 = vmatprep.subr.mxu0 0.0
    %1517 = vmatpush1.msra.mxu0 0.0
    %1518 = vmatprep.subr.mxu0 0.0
    %1519 = vmatpush1.msra.mxu0 0.0
    %1520 = vmatprep.subr.mxu0 0.0
    %1521 = vmatpush1.msra.mxu0 0.0
    %1522 = vmatprep.subr.mxu0 0.0
    %1523 = vmatpush1.msra.mxu0 0.0
    %1524 = vmatprep.subr.mxu0 0.0
    %1525 = vmatpush1.msra.mxu0 0.0
    %1526 = vmatprep.subr.mxu0 0.0
    %1527 = vmatpush1.msra.mxu0 0.0
    %1528 = vmatprep.subr.mxu0 0.0
    %1529 = vmatpush1.msra.mxu0 0.0
    %1530 = vmatprep.subr.mxu0 0.0
    %1531 = vmatpush1.msra.mxu0 0.0
    %1532 = vmatprep.subr.mxu0 0.0
    %1533 = vmatpush1.msra.mxu0 0.0
    %1534 = vmatprep.subr.mxu0 0.0
    %1535 = vmatpush1.msra.mxu0 0.0
    %1536 = vmatprep.mubr.f32.mxu0 0.0
    %1537 = vmatmul.mubr.f32.gmra.mrb[0].mxu0 %v1470
    %v1538 = vpop.f32.mrb[0].mxu0
    %v1539 = vadd.f32 %v1451, %v1538
    %v1540 = vpop.f32.mrb[0].mxu0
    %v1541 = vadd.f32 %v1455, %v1540
    %1542 = vdwg.mxu0
    %1543 = vmatprep.subr.mxu0 %v1416
    %1544 = vmatpush1.msra.mxu0 %v1415
    %1545 = vmatprep.subr.mxu0 %v1420
    %1546 = vmatpush1.msra.mxu0 %v1419
    %1547 = vmatprep.subr.mxu0 %v1424
    %1548 = vmatpush1.msra.mxu0 %v1423
    %1549 = vmatprep.subr.mxu0 %v1428
    %1550 = vmatpush1.msra.mxu0 %v1427
    %1551 = vmatprep.subr.mxu0 %v1432
    %1552 = vmatpush1.msra.mxu0 %v1431
    %1553 = vmatprep.subr.mxu0 %v1436
    %1554 = vmatpush1.msra.mxu0 %v1435
    %1555 = vmatprep.subr.mxu0 %v1440
    %1556 = vmatpush1.msra.mxu0 %v1439
    %1557 = vmatprep.subr.mxu0 %v1444
    %1558 = vmatpush1.msra.mxu0 %v1443
    %1559 = vmatprep.subr.mxu0 0.0
    %1560 = vmatpush1.msra.mxu0 0.0
    %1561 = vmatprep.subr.mxu0 0.0
    %1562 = vmatpush1.msra.mxu0 0.0
    %1563 = vmatprep.subr.mxu0 0.0
    %1564 = vmatpush1.msra.mxu0 0.0
    %1565 = vmatprep.subr.mxu0 0.0
    %1566 = vmatpush1.msra.mxu0 0.0
    %1567 = vmatprep.subr.mxu0 0.0
    %1568 = vmatpush1.msra.mxu0 0.0
    %1569 = vmatprep.subr.mxu0 0.0
    %1570 = vmatpush1.msra.mxu0 0.0
    %1571 = vmatprep.subr.mxu0 0.0
    %1572 = vmatpush1.msra.mxu0 0.0
    %1573 = vmatprep.subr.mxu0 0.0
    %1574 = vmatpush1.msra.mxu0 0.0
    %1575 = vmatprep.subr.mxu0 0.0
    %1576 = vmatpush1.msra.mxu0 0.0
    %1577 = vmatprep.subr.mxu0 0.0
    %1578 = vmatpush1.msra.mxu0 0.0
    %1579 = vmatprep.subr.mxu0 0.0
    %1580 = vmatpush1.msra.mxu0 0.0
    %1581 = vmatprep.subr.mxu0 0.0
    %1582 = vmatpush1.msra.mxu0 0.0
    %1583 = vmatprep.subr.mxu0 0.0
    %1584 = vmatpush1.msra.mxu0 0.0
    %1585 = vmatprep.subr.mxu0 0.0
    %1586 = vmatpush1.msra.mxu0 0.0
    %1587 = vmatprep.subr.mxu0 0.0
    %1588 = vmatpush1.msra.mxu0 0.0
    %1589 = vmatprep.subr.mxu0 0.0
    %1590 = vmatpush1.msra.mxu0 0.0
    %1591 = vmatprep.subr.mxu0 0.0
    %1592 = vmatpush1.msra.mxu0 0.0
    %1593 = vmatprep.subr.mxu0 0.0
    %1594 = vmatpush1.msra.mxu0 0.0
    %1595 = vmatprep.subr.mxu0 0.0
    %1596 = vmatpush1.msra.mxu0 0.0
    %1597 = vmatprep.subr.mxu0 0.0
    %1598 = vmatpush1.msra.mxu0 0.0
    %1599 = vmatprep.subr.mxu0 0.0
    %1600 = vmatpush1.msra.mxu0 0.0
    %1601 = vmatprep.subr.mxu0 0.0
    %1602 = vmatpush1.msra.mxu0 0.0
    %1603 = vmatprep.subr.mxu0 0.0
    %1604 = vmatpush1.msra.mxu0 0.0
    %1605 = vmatprep.subr.mxu0 0.0
    %1606 = vmatpush1.msra.mxu0 0.0
    %1607 = vmatprep.mubr.f32.mxu0 0.0
    %1608 = vmatmul.mubr.f32.gmra.mrb[0].mxu0 %v1470
    %v1609 = vpop.f32.mrb[0].mxu0
    %v1610 = vadd.f32 %v1459, %v1609
    %v1611 = vpop.f32.mrb[0].mxu0
    %v1612 = vadd.f32 %v1463, %v1611
    %1613 = vdwg.mxu0
    %v1618 = vcombine.low %v1539, %v1541
    %v1619 = vcombine.low %v1610, %v1612
    %v1621 = vunpack.c.l.s4 1983009808
    %v1622 = vunpack.c.0.s8 %v1621
    %v1623 = vlaneseq
    %v1624 = vshrl.u32 %v1623, 7
    %v1625 = vsub.s32 %v1622, %v1624
    %v1626 = vrot.slane %v1618, %v1625
    %v1628 = vunpack.c.l.s4 1983009808
    %v1629 = vunpack.c.0.s8 %v1628
    %v1630 = vlaneseq
    %v1631 = vshrl.u32 %v1630, 7
    %v1632 = vsub.s32 %v1629, %v1631
    %v1633 = vrot.slane %v1619, %v1632
    %v1634 = vcombine.low %v1626, %v1633
    %1636 = vst [vmem:[#allocation9] sm:$0xff] %v1634
    // Predicated region
    $region26: #{tpu_custom_call.1} parent=1 // pred_check
      _
    $region27: #{tpu_custom_call.1} parent=1 // pred_check_branch
      %1638 = sbr.rel (0) target = $region29
    $region28: #{tpu_custom_call.1} parent=1 // pred_region
      %s1640 = ssub.s32 128, 128
      %1641 = vsyncadd [#allocation5], %s1640
      %s1643 = sshll.u32 [#allocation9], 4
      %s1644 = int_to_ptr.vmem [resolvable:$true] %s1643
      %1646 = dma.vmem_to_hbm [thread:$0]  %s1644, 128, %s3, [#allocation5]
    $region29: #{tpu_custom_call.1} parent=1 // pred_fallthru
      _
    // Predicated region
    $region30: #{tpu_custom_call.1} parent=1 // pred_check
      _
    $region31: #{tpu_custom_call.1} parent=1 // pred_check_branch
      %1648 = sbr.rel (0) target = $region33
    $region32: #{tpu_custom_call.1} parent=1 // pred_region
      %1649 = dma.done [#allocation5], 128
    $region33: #{tpu_custom_call.1} parent=1 // pred_fallthru
      _
    %1650 = vsyncpa [#allocation4], 1
    %1651 = vsyncpa [#allocation7], 1
    %1652 = vsyncpa [#allocation5], 1

</llo_original>
